<compile_context>
chip_gen: v6e
topology: v6e:2x2x1
jax: 0.10.0
libtpu: 0.0.40
codegen_flags: <defaults>
</compile_context>

<pallas_src>
import jax
import jax.numpy as jnp
from jax.experimental import pallas as pl
from jax.experimental.pallas import tpu as pltpu

LANE = 128


# --------------------------------------------------------------------------- #
# Kernel 1: backbone stand-in -- conv3x3 (im2col matmul) + ReLU + global-avg-pool
# --------------------------------------------------------------------------- #
def backbone_kernel(patches_ref, wc_ref, bc_ref, feat_ref):
    G, Fp = feat_ref.shape
    P = patches_ref.shape[0] // G          # patches per image (H*W), static

    # bf16 x bf16 -> f32 accumulate on the MXU; lane-dense contraction (Kp=128).
    conv = jnp.dot(patches_ref[...], wc_ref[...],
                   preferred_element_type=jnp.float32) + bc_ref[...]
    conv = jnp.maximum(conv, 0.0)                                # (G*P, Fp) f32

    # Global average pool per image: sublane reduction, written straight to the
    # per-step (G, Fp) output block (no accumulator, no masked RMW).
    pooled = jnp.sum(conv.reshape(G, P, Fp), axis=1) * (1.0 / P)
    feat_ref[...] = pooled


# --------------------------------------------------------------------------- #
# Kernel 2: MLP head -- predictor + projector + F.normalize (single invocation)
# --------------------------------------------------------------------------- #
def head_kernel(feat_ref,
                w1_ref, g1_ref, be1_ref,
                w2_ref, g2_ref, be2_ref,
                w3_ref, b3_ref,
                z_ref):
    bn_eps = 1e-5
    feat = feat_ref[...]                                         # (B, Fp) f32

    # predictor: Linear (bias cancels in train-mode BN) -> BN(batch) -> ReLU
    h = jnp.dot(feat.astype(jnp.bfloat16), w1_ref[...],
                preferred_element_type=jnp.float32)
    mu = jnp.mean(h, axis=0, keepdims=True)
    var = jnp.mean((h - mu) ** 2, axis=0, keepdims=True)         # biased variance
    scale = g1_ref[...] * jax.lax.rsqrt(var + bn_eps)
    shift = be1_ref[...] - mu * scale
    h = jnp.maximum(h * scale + shift, 0.0)                      # z_pre, (B, Hp)

    # projector: Linear -> BN -> ReLU -> Linear
    h2 = jnp.dot(h.astype(jnp.bfloat16), w2_ref[...],
                 preferred_element_type=jnp.float32)
    mu2 = jnp.mean(h2, axis=0, keepdims=True)
    var2 = jnp.mean((h2 - mu2) ** 2, axis=0, keepdims=True)
    scale2 = g2_ref[...] * jax.lax.rsqrt(var2 + bn_eps)
    shift2 = be2_ref[...] - mu2 * scale2
    h2 = jnp.maximum(h2 * scale2 + shift2, 0.0)

    z = jnp.dot(h2.astype(jnp.bfloat16), w3_ref[...],
                preferred_element_type=jnp.float32) + b3_ref[...]

    # F.normalize(z, p=2, dim=1)
    ss = jnp.sum(z * z, axis=1, keepdims=True)
    z_ref[...] = z * jax.lax.rsqrt(jnp.maximum(ss, 1e-24))


# --------------------------------------------------------------------------- #
# Wrapper
# --------------------------------------------------------------------------- #
def _pad2(a, rows, cols):
    return jnp.pad(a, ((0, rows - a.shape[0]), (0, cols - a.shape[1])))


def _pad_cols(a, cols):
    return jnp.pad(a, ((0, 0), (0, cols - a.shape[1])))


def _round_up(n, m=LANE):
    return ((n + m - 1) // m) * m


def encoder_forward(x_nchw, params, images_per_step=None):
    """x_nchw: [B, Cin, H, W] float32.  Returns z: [B, z_dim] float32."""
    (wc, bc, w1, b1, g1, be1, w2, b2, g2, be2, w3, b3) = params
    del b1, b2  # bias before training-mode BatchNorm1d cancels exactly in (h - mu)

    B, Cin, H, W = x_nchw.shape
    P = H * W
    K = 9 * Cin
    F = wc.shape[1]
    Hd = w1.shape[1]
    Z = w3.shape[1]
    Kp, Fp, Hp, Zp = _round_up(K), _round_up(F), _round_up(Hd), _round_up(Z)

    # images per grid step: whole batch at demo size; groups of 8 (sublane-aligned
    # per-step output blocks) for larger batches, sharded across cores.
    G = images_per_step if images_per_step is not None else min(B, 8)
    assert B % G == 0, "batch must be divisible by images_per_step"

    # ---- glue: NCHW -> NHWC -> im2col patches, bf16, lane-dense K (pad to 128) --
    x_nhwc = jnp.transpose(x_nchw, (0, 2, 3, 1))
    xp = jnp.pad(x_nhwc, ((0, 0), (1, 1), (1, 1), (0, 0)))
    taps = [xp[:, dy:dy + H, dx:dx + W, :] for dy in range(3) for dx in range(3)]
    patches = jnp.stack(taps, axis=-2).reshape(B * P, K)
    patches = jnp.pad(patches, ((0, 0), (0, Kp - K))).astype(jnp.bfloat16)

    # ---- lane-dense bf16 weights, f32 BN params --------------------------------
    wc_p = _pad2(wc, Kp, Fp).astype(jnp.bfloat16)
    bc_p = _pad_cols(bc, Fp)
    w1_p = _pad2(w1, Fp, Hp).astype(jnp.bfloat16)
    g1_p = _pad_cols(g1, Hp)
    be1_p = _pad_cols(be1, Hp)
    w2_p = _pad2(w2, Hp, Hp).astype(jnp.bfloat16)
    g2_p = _pad_cols(g2, Hp)
    be2_p = _pad_cols(be2, Hp)
    w3_p = _pad2(w3, Hp, Zp).astype(jnp.bfloat16)
    b3_p = _pad_cols(b3, Zp)

    # ---- call 1: backbone + pool, parallel batch-group axis --------------------
    feats = pl.pallas_call(
        backbone_kernel,
        out_shape=jax.ShapeDtypeStruct((B, Fp), jnp.float32),
        grid_spec=pltpu.PrefetchScalarGridSpec(
            num_scalar_prefetch=0,
            grid=(B // G,),
            in_specs=[
                pl.BlockSpec((G * P, Kp), lambda i: (i, 0)),   # streamed patch tile
                pl.BlockSpec((Kp, Fp), lambda i: (0, 0)),       # resident conv weight
                pl.BlockSpec((1, Fp), lambda i: (0, 0)),        # resident conv bias
            ],
            out_specs=pl.BlockSpec((G, Fp), lambda i: (i, 0)),  # per-step pooled rows
        ),
        compiler_params=pltpu.CompilerParams(
            dimension_semantics=("parallel",),      # independent per-step rows
            vmem_limit_bytes=48 * 1024 * 1024,
        ),
    )(patches, wc_p, bc_p)

    # ---- call 2: tiny MLP head, single invocation, everything resident ---------
    z_padded = pl.pallas_call(
        head_kernel,
        out_shape=jax.ShapeDtypeStruct((B, Zp), jnp.float32),
    )(feats, w1_p, g1_p, be1_p, w2_p, g2_p, be2_p, w3_p, b3_p)

    return z_padded[:, :Z]


# --------------------------------------------------------------------------- #
# Pure-JAX f32 reference (mirrors the PyTorch forward, training-mode BN)
# --------------------------------------------------------------------------- #
def encoder_reference(x_nchw, params):
    (wc, bc, w1, b1, g1, be1, w2, b2, g2, be2, w3, b3) = params
    B, Cin, H, W = x_nchw.shape
    x_nhwc = jnp.transpose(x_nchw, (0, 2, 3, 1))
    xp = jnp.pad(x_nhwc, ((0, 0), (1, 1), (1, 1), (0, 0)))
    taps = [xp[:, dy:dy + H, dx:dx + W, :] for dy in range(3) for dx in range(3)]
    patches = jnp.stack(taps, axis=-2).reshape(B, H * W, 9 * Cin)
    conv = jnp.maximum(patches @ wc + bc, 0.0)
    feat = jnp.mean(conv, axis=1)

    def bn(h, g, be):
        mu = jnp.mean(h, axis=0, keepdims=True)
        var = jnp.mean((h - mu) ** 2, axis=0, keepdims=True)
        return (h - mu) * g * jax.lax.rsqrt(var + 1e-5) + be

    h = jnp.maximum(bn(feat @ w1 + b1, g1, be1), 0.0)
    h2 = jnp.maximum(bn(h @ w2 + b2, g2, be2), 0.0)
    z = h2 @ w3 + b3
    ss = jnp.sum(z * z, axis=1, keepdims=True)
    return z * jax.lax.rsqrt(jnp.maximum(ss, 1e-24))


def init_params(key, cin=3, feature_dim=32, hidden_dim=64, z_dim=32):
    ks = jax.random.split(key, 4)
    # conv 3x3: stored (3,3,Cin,Cout) -> (9*Cin, Cout), matching patch ordering
    wc = 0.1 * jax.random.normal(ks[0], (3, 3, cin, feature_dim), jnp.float32)
    wc = wc.reshape(9 * cin, feature_dim)
    bc = jnp.zeros((1, feature_dim), jnp.float32)

    w1 = 0.05 * jax.random.normal(ks[1], (feature_dim, hidden_dim), jnp.float32)
    b1 = jnp.zeros((1, hidden_dim), jnp.float32)    # present to mirror nn.Linear;
    g1 = jnp.ones((1, hidden_dim), jnp.float32)     # cancels under train-mode BN
    be1 = jnp.zeros((1, hidden_dim), jnp.float32)

    w2 = 0.05 * jax.random.normal(ks[2], (hidden_dim, hidden_dim), jnp.float32)
    b2 = jnp.zeros((1, hidden_dim), jnp.float32)
    g2 = jnp.ones((1, hidden_dim), jnp.float32)
    be2 = jnp.zeros((1, hidden_dim), jnp.float32)

    w3 = 0.05 * jax.random.normal(ks[3], (hidden_dim, z_dim), jnp.float32)
    b3 = jnp.zeros((1, z_dim), jnp.float32)

    return (wc, bc, w1, b1, g1, be1, w2, b2, g2, be2, w3, b3)


if __name__ == "__main__":
    key = jax.random.PRNGKey(0)
    k_x, k_p = jax.random.split(key)

    # batch >= 8 so the (B, hidden) head tensors fill whole sublanes
    B, Cin, H, W = 8, 3, 16, 16
    x = jax.random.normal(k_x, (B, Cin, H, W), jnp.float32)

    params = init_params(k_p, cin=Cin, feature_dim=32, hidden_dim=64, z_dim=32)

    fwd = jax.jit(lambda xx: encoder_forward(xx, params))
    z = jax.block_until_ready(fwd(x))

    assert z.shape == (B, 32)
    assert bool(jnp.all(jnp.isfinite(z)))
    row_norms = jnp.sqrt(jnp.sum(z * z, axis=1))
    assert bool(jnp.all(jnp.abs(row_norms - 1.0) < 1e-3))

    # bf16 matmuls in-kernel vs f32 reference -> loose tolerance
    z_ref = encoder_reference(x, params)
    assert float(jnp.max(jnp.abs(z - z_ref))) < 5e-2

    print("KERNEL_OK")
</pallas_src>

<mosaic_0001>
module attributes {stable_mosaic.version = 11 : i64} {
  func.func @backbone_kernel(%arg0: i32, %arg1: memref<2048x128xbf16, #tpu.memory_space<vmem>>, %arg2: memref<128x128xbf16, #tpu.memory_space<vmem>>, %arg3: memref<1x128xf32, #tpu.memory_space<vmem>>, %arg4: memref<8x128xf32, #tpu.memory_space<vmem>>) attributes {dimension_semantics = [#tpu.dimension_semantics<parallel>], iteration_bounds = array<i64: 1>, scalar_prefetch = 0 : i64, scratch_operands = 0 : i64, tpu.core_type = #tpu.core_type<tc>, window_params = [{transform_indices = @transform_0, window_bounds = array<i64: 2048, 128>}, {pipeline_mode = #tpu.pipeline_mode<synchronous>, transform_indices = @transform_1, window_bounds = array<i64: 128, 128>}, {pipeline_mode = #tpu.pipeline_mode<synchronous>, transform_indices = @transform_2, window_bounds = array<i64: 1, 128>}, {transform_indices = @transform_3, window_bounds = array<i64: 8, 128>}]} {
    %c0 = arith.constant 0 : index
    %c0_0 = arith.constant 0 : index
    %0 = vector.load %arg1[%c0, %c0_0] : memref<2048x128xbf16, #tpu.memory_space<vmem>>, vector<2048x128xbf16>
    %c0_1 = arith.constant 0 : index
    %c0_2 = arith.constant 0 : index
    %1 = vector.load %arg2[%c0_1, %c0_2] : memref<128x128xbf16, #tpu.memory_space<vmem>>, vector<128x128xbf16>
    %cst = arith.constant dense<0.000000e+00> : vector<2048x128xf32>
    %2 = tpu.matmul %0, %1, %cst {dimension_numbers = #tpu.dot_dimension_numbers<[1], [0], [0], [1], [0, 0, 1, 1], [], []>} : vector<2048x128xbf16>, vector<128x128xbf16>, vector<2048x128xf32> -> vector<2048x128xf32>
    %c0_3 = arith.constant 0 : index
    %c0_4 = arith.constant 0 : index
    %3 = vector.load %arg3[%c0_3, %c0_4] : memref<1x128xf32, #tpu.memory_space<vmem>>, vector<1x128xf32>
    %4 = vector.broadcast %3 : vector<1x128xf32> to vector<2048x128xf32>
    %5 = arith.addf %2, %4 : vector<2048x128xf32>
    %cst_5 = arith.constant 0.000000e+00 : f32
    %6 = vector.broadcast %cst_5 : f32 to vector<2048x128xf32>
    %7 = arith.maximumf %5, %6 : vector<2048x128xf32>
    %8 = vector.shape_cast %7 : vector<2048x128xf32> to vector<8x256x128xf32>
    %cst_6 = arith.constant dense<0.000000e+00> : vector<8x128xf32>
    %9 = vector.multi_reduction <add>, %8, %cst_6 [1] : vector<8x256x128xf32> to vector<8x128xf32>
    %cst_7 = arith.constant 3.906250e-03 : f32
    %10 = vector.broadcast %cst_7 : f32 to vector<8x128xf32>
    %11 = arith.mulf %9, %10 : vector<8x128xf32>
    %c0_8 = arith.constant 0 : index
    %c0_9 = arith.constant 0 : index
    %12 = vector.load %arg4[%c0_8, %c0_9] : memref<8x128xf32, #tpu.memory_space<vmem>>, vector<8x128xf32>
    tpu.vector_store %arg4[%c0_8, %c0_9], %11 {strides = array<i32>} : memref<8x128xf32, #tpu.memory_space<vmem>>, vector<8x128xf32>,
    return
  }
  func.func @transform_0(%arg0: i32) -> (i32, i32) {
    %c0_i32 = arith.constant 0 : i32
    %c0_i32_0 = arith.constant 0 : i32
    return %arg0, %c0_i32 : i32, i32
  }
  func.func @transform_1(%arg0: i32) -> (i32, i32) {
    %c0_i32 = arith.constant 0 : i32
    %c0_i32_0 = arith.constant 0 : i32
    %c0_i32_1 = arith.constant 0 : i32
    return %c0_i32, %c0_i32_0 : i32, i32
  }
  func.func @transform_2(%arg0: i32) -> (i32, i32) {
    %c0_i32 = arith.constant 0 : i32
    %c0_i32_0 = arith.constant 0 : i32
    %c0_i32_1 = arith.constant 0 : i32
    return %c0_i32, %c0_i32_0 : i32, i32
  }
  func.func @transform_3(%arg0: i32) -> (i32, i32) {
    %c0_i32 = arith.constant 0 : i32
    %c0_i32_0 = arith.constant 0 : i32
    return %arg0, %c0_i32 : i32, i32
  }
}

module attributes {stable_mosaic.version = 11 : i64} {
  func.func @head_kernel(%arg0: memref<8x128xf32, #tpu.memory_space<vmem>>, %arg1: memref<128x128xbf16, #tpu.memory_space<vmem>>, %arg2: memref<1x128xf32, #tpu.memory_space<vmem>>, %arg3: memref<1x128xf32, #tpu.memory_space<vmem>>, %arg4: memref<128x128xbf16, #tpu.memory_space<vmem>>, %arg5: memref<1x128xf32, #tpu.memory_space<vmem>>, %arg6: memref<1x128xf32, #tpu.memory_space<vmem>>, %arg7: memref<128x128xbf16, #tpu.memory_space<vmem>>, %arg8: memref<1x128xf32, #tpu.memory_space<vmem>>, %arg9: memref<8x128xf32, #tpu.memory_space<vmem>>) attributes {dimension_semantics = [], scalar_prefetch = 0 : i64, scratch_operands = 0 : i64, tpu.core_type = #tpu.core_type<tc>} {
    %c0 = arith.constant 0 : index
    %c0_0 = arith.constant 0 : index
    %0 = vector.load %arg0[%c0, %c0_0] : memref<8x128xf32, #tpu.memory_space<vmem>>, vector<8x128xf32>
    %1 = arith.truncf %0 : vector<8x128xf32> to vector<8x128xbf16>
    %c0_1 = arith.constant 0 : index
    %c0_2 = arith.constant 0 : index
    %2 = vector.load %arg1[%c0_1, %c0_2] : memref<128x128xbf16, #tpu.memory_space<vmem>>, vector<128x128xbf16>
    %cst = arith.constant dense<0.000000e+00> : vector<8x128xf32>
    %3 = tpu.matmul %1, %2, %cst {dimension_numbers = #tpu.dot_dimension_numbers<[1], [0], [0], [1], [0, 0, 1, 1], [], []>} : vector<8x128xbf16>, vector<128x128xbf16>, vector<8x128xf32> -> vector<8x128xf32>
    %cst_3 = arith.constant dense<0.000000e+00> : vector<128xf32>
    %4 = vector.multi_reduction <add>, %3, %cst_3 [0] : vector<8x128xf32> to vector<128xf32>
    %5 = vector.shape_cast %4 : vector<128xf32> to vector<1x128xf32>
    %cst_4 = arith.constant 8.000000e+00 : f32
    %6 = vector.broadcast %cst_4 : f32 to vector<1x128xf32>
    %7 = arith.divf %5, %6 : vector<1x128xf32>
    %8 = vector.broadcast %7 : vector<1x128xf32> to vector<8x128xf32>
    %9 = arith.subf %3, %8 : vector<8x128xf32>
    %10 = arith.mulf %9, %9 : vector<8x128xf32>
    %cst_5 = arith.constant dense<0.000000e+00> : vector<128xf32>
    %11 = vector.multi_reduction <add>, %10, %cst_5 [0] : vector<8x128xf32> to vector<128xf32>
    %12 = vector.shape_cast %11 : vector<128xf32> to vector<1x128xf32>
    %cst_6 = arith.constant 8.000000e+00 : f32
    %13 = vector.broadcast %cst_6 : f32 to vector<1x128xf32>
    %14 = arith.divf %12, %13 : vector<1x128xf32>
    %c0_7 = arith.constant 0 : index
    %c0_8 = arith.constant 0 : index
    %15 = vector.load %arg2[%c0_7, %c0_8] : memref<1x128xf32, #tpu.memory_space<vmem>>, vector<1x128xf32>
    %cst_9 = arith.constant 9.99999974E-6 : f32
    %16 = vector.broadcast %cst_9 : f32 to vector<1x128xf32>
    %17 = arith.addf %14, %16 : vector<1x128xf32>
    %18 = math.rsqrt %17 : vector<1x128xf32>
    %19 = arith.mulf %15, %18 : vector<1x128xf32>
    %c0_10 = arith.constant 0 : index
    %c0_11 = arith.constant 0 : index
    %20 = vector.load %arg3[%c0_10, %c0_11] : memref<1x128xf32, #tpu.memory_space<vmem>>, vector<1x128xf32>
    %21 = arith.mulf %7, %19 : vector<1x128xf32>
    %22 = arith.subf %20, %21 : vector<1x128xf32>
    %23 = vector.broadcast %19 : vector<1x128xf32> to vector<8x128xf32>
    %24 = arith.mulf %3, %23 : vector<8x128xf32>
    %25 = vector.broadcast %22 : vector<1x128xf32> to vector<8x128xf32>
    %26 = arith.addf %24, %25 : vector<8x128xf32>
    %cst_12 = arith.constant 0.000000e+00 : f32
    %27 = vector.broadcast %cst_12 : f32 to vector<8x128xf32>
    %28 = arith.maximumf %26, %27 : vector<8x128xf32>
    %29 = arith.truncf %28 : vector<8x128xf32> to vector<8x128xbf16>
    %c0_13 = arith.constant 0 : index
    %c0_14 = arith.constant 0 : index
    %30 = vector.load %arg4[%c0_13, %c0_14] : memref<128x128xbf16, #tpu.memory_space<vmem>>, vector<128x128xbf16>
    %cst_15 = arith.constant dense<0.000000e+00> : vector<8x128xf32>
    %31 = tpu.matmul %29, %30, %cst_15 {dimension_numbers = #tpu.dot_dimension_numbers<[1], [0], [0], [1], [0, 0, 1, 1], [], []>} : vector<8x128xbf16>, vector<128x128xbf16>, vector<8x128xf32> -> vector<8x128xf32>
    %cst_16 = arith.constant dense<0.000000e+00> : vector<128xf32>
    %32 = vector.multi_reduction <add>, %31, %cst_16 [0] : vector<8x128xf32> to vector<128xf32>
    %33 = vector.shape_cast %32 : vector<128xf32> to vector<1x128xf32>
    %cst_17 = arith.constant 8.000000e+00 : f32
    %34 = vector.broadcast %cst_17 : f32 to vector<1x128xf32>
    %35 = arith.divf %33, %34 : vector<1x128xf32>
    %36 = vector.broadcast %35 : vector<1x128xf32> to vector<8x128xf32>
    %37 = arith.subf %31, %36 : vector<8x128xf32>
    %38 = arith.mulf %37, %37 : vector<8x128xf32>
    %cst_18 = arith.constant dense<0.000000e+00> : vector<128xf32>
    %39 = vector.multi_reduction <add>, %38, %cst_18 [0] : vector<8x128xf32> to vector<128xf32>
    %40 = vector.shape_cast %39 : vector<128xf32> to vector<1x128xf32>
    %cst_19 = arith.constant 8.000000e+00 : f32
    %41 = vector.broadcast %cst_19 : f32 to vector<1x128xf32>
    %42 = arith.divf %40, %41 : vector<1x128xf32>
    %c0_20 = arith.constant 0 : index
    %c0_21 = arith.constant 0 : index
    %43 = vector.load %arg5[%c0_20, %c0_21] : memref<1x128xf32, #tpu.memory_space<vmem>>, vector<1x128xf32>
    %cst_22 = arith.constant 9.99999974E-6 : f32
    %44 = vector.broadcast %cst_22 : f32 to vector<1x128xf32>
    %45 = arith.addf %42, %44 : vector<1x128xf32>
    %46 = math.rsqrt %45 : vector<1x128xf32>
    %47 = arith.mulf %43, %46 : vector<1x128xf32>
    %c0_23 = arith.constant 0 : index
    %c0_24 = arith.constant 0 : index
    %48 = vector.load %arg6[%c0_23, %c0_24] : memref<1x128xf32, #tpu.memory_space<vmem>>, vector<1x128xf32>
    %49 = arith.mulf %35, %47 : vector<1x128xf32>
    %50 = arith.subf %48, %49 : vector<1x128xf32>
    %51 = vector.broadcast %47 : vector<1x128xf32> to vector<8x128xf32>
    %52 = arith.mulf %31, %51 : vector<8x128xf32>
    %53 = vector.broadcast %50 : vector<1x128xf32> to vector<8x128xf32>
    %54 = arith.addf %52, %53 : vector<8x128xf32>
    %cst_25 = arith.constant 0.000000e+00 : f32
    %55 = vector.broadcast %cst_25 : f32 to vector<8x128xf32>
    %56 = arith.maximumf %54, %55 : vector<8x128xf32>
    %57 = arith.truncf %56 : vector<8x128xf32> to vector<8x128xbf16>
    %c0_26 = arith.constant 0 : index
    %c0_27 = arith.constant 0 : index
    %58 = vector.load %arg7[%c0_26, %c0_27] : memref<128x128xbf16, #tpu.memory_space<vmem>>, vector<128x128xbf16>
    %cst_28 = arith.constant dense<0.000000e+00> : vector<8x128xf32>
    %59 = tpu.matmul %57, %58, %cst_28 {dimension_numbers = #tpu.dot_dimension_numbers<[1], [0], [0], [1], [0, 0, 1, 1], [], []>} : vector<8x128xbf16>, vector<128x128xbf16>, vector<8x128xf32> -> vector<8x128xf32>
    %c0_29 = arith.constant 0 : index
    %c0_30 = arith.constant 0 : index
    %60 = vector.load %arg8[%c0_29, %c0_30] : memref<1x128xf32, #tpu.memory_space<vmem>>, vector<1x128xf32>
    %61 = vector.broadcast %60 : vector<1x128xf32> to vector<8x128xf32>
    %62 = arith.addf %59, %61 : vector<8x128xf32>
    %63 = arith.mulf %62, %62 : vector<8x128xf32>
    %cst_31 = arith.constant dense<0.000000e+00> : vector<8xf32>
    %64 = vector.multi_reduction <add>, %63, %cst_31 [1] : vector<8x128xf32> to vector<8xf32>
    %65 = vector.shape_cast %64 : vector<8xf32> to vector<8x1xf32>
    %cst_32 = arith.constant 1.000000e-24 : f32
    %66 = vector.broadcast %cst_32 : f32 to vector<8x1xf32>
    %67 = arith.maximumf %65, %66 : vector<8x1xf32>
    %68 = math.rsqrt %67 : vector<8x1xf32>
    %69 = vector.broadcast %68 : vector<8x1xf32> to vector<8x128xf32>
    %70 = arith.mulf %62, %69 : vector<8x128xf32>
    %c0_33 = arith.constant 0 : index
    %c0_34 = arith.constant 0 : index
    %71 = vector.load %arg9[%c0_33, %c0_34] : memref<8x128xf32, #tpu.memory_space<vmem>>, vector<8x128xf32>
    tpu.vector_store %arg9[%c0_33, %c0_34], %70 {strides = array<i32>} : memref<8x128xf32, #tpu.memory_space<vmem>>, vector<8x128xf32>,
    return
  }
}

</mosaic_0001>

<llo_original>
// kernel: _lambda_.3
$region0: #{_lambda_.3}
  #allocation0 [shape = 'u32[]', space=smem, size = 0x4, offset = 0x4, fixed_abs, tag = 'smem constant byte address 0x4 - core index']
  #allocation1 [shape = 'u32[144,128]{1,0:T(1,128)}', space=vmem, size = 0x12000, scoped, tag = 'internal scratch']
  %s0 = inlined_call_operand.vmem [shape: f32[8,128], index: 0, kind: input, shape index: {}]
  %s1 = inlined_call_operand.vmem [shape: bf16[128,128], index: 1, kind: input, shape index: {}]
  %s2 = inlined_call_operand.vmem [shape: f32[1,128], index: 2, kind: input, shape index: {}, may-alias: {2,5}]
  %s3 = inlined_call_operand.vmem [shape: f32[1,128], index: 3, kind: input, shape index: {}, may-alias: {3,6}]
  %s4 = inlined_call_operand.vmem [shape: bf16[128,128], index: 4, kind: input, shape index: {}]
  %s5 = inlined_call_operand.vmem [shape: f32[1,128], index: 5, kind: input, shape index: {}, may-alias: {2,5}]
  %s6 = inlined_call_operand.vmem [shape: f32[1,128], index: 6, kind: input, shape index: {}, may-alias: {3,6}]
  %s7 = inlined_call_operand.vmem [shape: bf16[128,128], index: 7, kind: input, shape index: {}]
  %s8 = inlined_call_operand.vmem [shape: f32[1,128], index: 8, kind: input, shape index: {}]
  %s9 = inlined_call_operand.hbm [shape: f32[8,128], index: 9, kind: output, shape index: {}]
  %s10 = sld [smem:[#allocation0]]
  $region46: #{_lambda_.3} parent=0
    _
  %s12 = ssub.s32 1, %s10
  %s13 = scalar_select 0, %s12, %s10
  $region1: #{_lambda_.3} parent=0
    #allocation2 [shape = 'u8[4096]{0}', space=vmem, size = 0x1000, scoped, tag = 'output window, operand 0, single buffered']
    #allocation3 [shape = 's32[1]{0}', space=sflag, size = 0x4, scoped, tag = 'scoped memory for _lambda_.3']
    %14 = vsyncpa [#allocation3], 0
    // Predicated region
    $region2: #{_lambda_.3} parent=1 // pred_check
      _
    $region3: #{_lambda_.3} parent=1 // pred_check_branch
      %16 = sbr.rel (0) target = $region5
    $region4: #{_lambda_.3} parent=1 // pred_region
      _
    $region5: #{_lambda_.3} parent=1 // pred_fallthru
      _
    // Predicated region
    $region6: #{_lambda_.3} parent=1 // pred_check
      _
    $region7: #{_lambda_.3} parent=1 // pred_check_branch
      %18 = sbr.rel (0) target = $region9
    $region8: #{_lambda_.3} parent=1 // pred_region
      _
    $region9: #{_lambda_.3} parent=1 // pred_fallthru
      _
    // Predicated region
    $region10: #{_lambda_.3} parent=1 // pred_check
      _
    $region11: #{_lambda_.3} parent=1 // pred_check_branch
      %20 = sbr.rel (0) target = $region13
    $region12: #{_lambda_.3} parent=1 // pred_region
      _
    $region13: #{_lambda_.3} parent=1 // pred_fallthru
      _
    // Predicated region
    $region14: #{_lambda_.3} parent=1 // pred_check
      _
    $region15: #{_lambda_.3} parent=1 // pred_check_branch
      %22 = sbr.rel (0) target = $region17
    $region16: #{_lambda_.3} parent=1 // pred_region
      _
    $region17: #{_lambda_.3} parent=1 // pred_fallthru
      _
    // Predicated region
    $region18: #{_lambda_.3} parent=1 // pred_check
      _
    $region19: #{_lambda_.3} parent=1 // pred_check_branch
      %24 = sbr.rel (0) target = $region21
    $region20: #{_lambda_.3} parent=1 // pred_region
      _
    $region21: #{_lambda_.3} parent=1 // pred_fallthru
      _
    // Predicated region
    $region22: #{_lambda_.3} parent=1 // pred_check
      _
    $region23: #{_lambda_.3} parent=1 // pred_check_branch
      %26 = sbr.rel (0) target = $region25
    $region24: #{_lambda_.3} parent=1 // pred_region
      _
    $region25: #{_lambda_.3} parent=1 // pred_fallthru
      _
    // Predicated region
    $region26: #{_lambda_.3} parent=1 // pred_check
      _
    $region27: #{_lambda_.3} parent=1 // pred_check_branch
      %28 = sbr.rel (0) target = $region29
    $region28: #{_lambda_.3} parent=1 // pred_region
      _
    $region29: #{_lambda_.3} parent=1 // pred_fallthru
      _
    // Predicated region
    $region30: #{_lambda_.3} parent=1 // pred_check
      _
    $region31: #{_lambda_.3} parent=1 // pred_check_branch
      %30 = sbr.rel (0) target = $region33
    $region32: #{_lambda_.3} parent=1 // pred_region
      _
    $region33: #{_lambda_.3} parent=1 // pred_fallthru
      _
    // Predicated region
    $region34: #{_lambda_.3} parent=1 // pred_check
      _
    $region35: #{_lambda_.3} parent=1 // pred_check_branch
      %32 = sbr.rel (0) target = $region37
    $region36: #{_lambda_.3} parent=1 // pred_region
      _
    $region37: #{_lambda_.3} parent=1 // pred_fallthru
      _
    %v34 = vld [vmem:[%s0] sm:$0xff]
    %v35 = vpack.c.bf16 %v34, %v34
    %v36 = vld [vmem:[%s1] sm:$0xf]
    %v37 = vld [vmem:[%s1 + $0x4] sm:$0xf]
    %v38 = vld [vmem:[%s1 + $0x8] sm:$0xf]
    %v39 = vld [vmem:[%s1 + $0xc] sm:$0xf]
    %v40 = vld [vmem:[%s1 + $0x10] sm:$0xf]
    %v41 = vld [vmem:[%s1 + $0x14] sm:$0xf]
    %v42 = vld [vmem:[%s1 + $0x18] sm:$0xf]
    %v43 = vld [vmem:[%s1 + $0x1c] sm:$0xf]
    %v44 = vld [vmem:[%s1 + $0x20] sm:$0xf]
    %v45 = vld [vmem:[%s1 + $0x24] sm:$0xf]
    %v46 = vld [vmem:[%s1 + $0x28] sm:$0xf]
    %v47 = vld [vmem:[%s1 + $0x2c] sm:$0xf]
    %v48 = vld [vmem:[%s1 + $0x30] sm:$0xf]
    %v49 = vld [vmem:[%s1 + $0x34] sm:$0xf]
    %v50 = vld [vmem:[%s1 + $0x38] sm:$0xf]
    %v51 = vld [vmem:[%s1 + $0x3c] sm:$0xf]
    %v68 = vunpack.c.l.b16 %v36
    %v69 = vunpack.c.l.b16 %v37
    %v70 = vunpack.c.l.b16 %v38
    %v71 = vunpack.c.l.b16 %v39
    %v72 = vunpack.c.l.b16 %v40
    %v73 = vunpack.c.l.b16 %v41
    %v74 = vunpack.c.l.b16 %v42
    %v75 = vunpack.c.l.b16 %v43
    %v76 = vunpack.c.l.b16 %v44
    %v77 = vunpack.c.l.b16 %v45
    %v78 = vunpack.c.l.b16 %v46
    %v79 = vunpack.c.l.b16 %v47
    %v80 = vunpack.c.l.b16 %v48
    %v81 = vunpack.c.l.b16 %v49
    %v82 = vunpack.c.l.b16 %v50
    %v83 = vunpack.c.l.b16 %v51
    %v84 = vpack.c.b16 %v69, %v68
    %v85 = vpack.c.b16 %v71, %v70
    %v86 = vpack.c.b16 %v73, %v72
    %v87 = vpack.c.b16 %v75, %v74
    %v88 = vpack.c.b16 %v77, %v76
    %v89 = vpack.c.b16 %v79, %v78
    %v90 = vpack.c.b16 %v81, %v80
    %v91 = vpack.c.b16 %v83, %v82
    %100 = vmatprep.subr.bf16.mxu0 0
    %101 = vmatpush1.bf16.msra.mxu0 %v91
    %102 = vmatprep.subr.bf16.mxu0 0
    %103 = vmatpush1.bf16.msra.mxu0 %v90
    %104 = vmatprep.subr.bf16.mxu0 0
    %105 = vmatpush1.bf16.msra.mxu0 %v89
    %106 = vmatprep.subr.bf16.mxu0 0
    %107 = vmatpush1.bf16.msra.mxu0 %v88
    %108 = vmatprep.subr.bf16.mxu0 0
    %109 = vmatpush1.bf16.msra.mxu0 %v87
    %110 = vmatprep.subr.bf16.mxu0 0
    %111 = vmatpush1.bf16.msra.mxu0 %v86
    %112 = vmatprep.subr.bf16.mxu0 0
    %113 = vmatpush1.bf16.msra.mxu0 %v85
    %114 = vmatprep.subr.bf16.mxu0 0
    %115 = vmatpush1.bf16.msra.mxu0 %v84
    %116 = vmatprep.subr.bf16.mxu0 0
    %117 = vmatpush2.bf16.msra.mxu0 0
    %118 = vmatprep.subr.bf16.mxu0 0
    %119 = vmatpush2.bf16.msra.mxu0 0
    %120 = vmatprep.subr.bf16.mxu0 0
    %121 = vmatpush2.bf16.msra.mxu0 0
    %122 = vmatprep.subr.bf16.mxu0 0
    %123 = vmatpush2.bf16.msra.mxu0 0
    %124 = vmatprep.subr.bf16.mxu0 0
    %125 = vmatpush2.bf16.msra.mxu0 0
    %126 = vmatprep.subr.bf16.mxu0 0
    %127 = vmatpush2.bf16.msra.mxu0 0
    %128 = vmatprep.subr.bf16.mxu0 0
    %129 = vmatpush2.bf16.msra.mxu0 0
    %130 = vmatprep.subr.bf16.mxu0 0
    %131 = vmatpush2.bf16.msra.mxu0 0
    %132 = vmatprep.mubr.bf16.mxu0 0
    %133 = vmatmul.mubr.bf16.gmra.mxu0 %v35
    %v134 = vpop.f32.mrf.mxu0
    %v135 = vadd.f32 0.0, %v134
    %v136 = vpop.f32.mrf.mxu0
    %v137 = vpop.f32.mrf.mxu0
    %v138 = vpop.f32.mrf.mxu0
    %139 = vdwg.mxu0
    %v140 = vrot.slane %v135, 4
    %v141 = vadd.f32 %v135, %v140
    %v142 = vrot.slane %v141, 2
    %v143 = vadd.f32 %v141, %v142
    %v144 = vrot.slane %v143, 1
    %v145 = vadd.f32 %v143, %v144
    %v146 = vrcp.pop 8.0
    %v147 = vmul.f32 %v145, %v146
    %v148 = vsub.f32 %v135, %v147
    %v149 = vmul.f32 %v148, %v148
    %v150 = vrot.slane %v149, 4
    %v151 = vadd.f32 %v149, %v150
    %v152 = vrot.slane %v151, 2
    %v153 = vadd.f32 %v151, %v152
    %v154 = vrot.slane %v153, 1
    %v155 = vadd.f32 %v153, %v154
    %v156 = vmul.f32 %v155, %v146
    %v157 = vld [vmem:[%s2] sm:$0x1]
    %v158 = vadd.f32 %v156, 1e-05
    %v159 = vrsqrt.pop %v158
    %v160 = vmul.f32 %v157, %v159
    %v161 = vld [vmem:[%s3] sm:$0x1]
    %v162 = vmul.f32 %v147, %v160
    %v163 = vsub.f32 %v161, %v162
    %v165 = vlaneseq
    %v166 = vshrl.u32 %v165, 7
    %v167 = vsub.s32 0, %v166
    %v168 = vrot.slane %v160, %v167
    %v170 = vmul.f32 %v135, %v168
    %v172 = vlaneseq
    %v173 = vshrl.u32 %v172, 7
    %v174 = vsub.s32 0, %v173
    %v175 = vrot.slane %v163, %v174
    %v177 = vadd.f32 %v170, %v175
    %v178 = vmax.f32 %v177, 0.0
    %v179 = vpack.c.bf16 %v178, %v178
    %v180 = vld [vmem:[%s4] sm:$0xf]
    %v181 = vld [vmem:[%s4 + $0x4] sm:$0xf]
    %v182 = vld [vmem:[%s4 + $0x8] sm:$0xf]
    %v183 = vld [vmem:[%s4 + $0xc] sm:$0xf]
    %v184 = vld [vmem:[%s4 + $0x10] sm:$0xf]
    %v185 = vld [vmem:[%s4 + $0x14] sm:$0xf]
    %v186 = vld [vmem:[%s4 + $0x18] sm:$0xf]
    %v187 = vld [vmem:[%s4 + $0x1c] sm:$0xf]
    %v188 = vld [vmem:[%s4 + $0x20] sm:$0xf]
    %v189 = vld [vmem:[%s4 + $0x24] sm:$0xf]
    %v190 = vld [vmem:[%s4 + $0x28] sm:$0xf]
    %v191 = vld [vmem:[%s4 + $0x2c] sm:$0xf]
    %v192 = vld [vmem:[%s4 + $0x30] sm:$0xf]
    %v193 = vld [vmem:[%s4 + $0x34] sm:$0xf]
    %v194 = vld [vmem:[%s4 + $0x38] sm:$0xf]
    %v195 = vld [vmem:[%s4 + $0x3c] sm:$0xf]
    %v212 = vunpack.c.l.b16 %v180
    %v213 = vunpack.c.l.b16 %v181
    %v214 = vunpack.c.l.b16 %v182
    %v215 = vunpack.c.l.b16 %v183
    %v216 = vunpack.c.l.b16 %v184
    %v217 = vunpack.c.l.b16 %v185
    %v218 = vunpack.c.l.b16 %v186
    %v219 = vunpack.c.l.b16 %v187
    %v220 = vunpack.c.l.b16 %v188
    %v221 = vunpack.c.l.b16 %v189
    %v222 = vunpack.c.l.b16 %v190
    %v223 = vunpack.c.l.b16 %v191
    %v224 = vunpack.c.l.b16 %v192
    %v225 = vunpack.c.l.b16 %v193
    %v226 = vunpack.c.l.b16 %v194
    %v227 = vunpack.c.l.b16 %v195
    %v228 = vpack.c.b16 %v213, %v212
    %v229 = vpack.c.b16 %v215, %v214
    %v230 = vpack.c.b16 %v217, %v216
    %v231 = vpack.c.b16 %v219, %v218
    %v232 = vpack.c.b16 %v221, %v220
    %v233 = vpack.c.b16 %v223, %v222
    %v234 = vpack.c.b16 %v225, %v224
    %v235 = vpack.c.b16 %v227, %v226
    %244 = vmatprep.subr.bf16.mxu0 0
    %245 = vmatpush1.bf16.msra.mxu0 %v235
    %246 = vmatprep.subr.bf16.mxu0 0
    %247 = vmatpush1.bf16.msra.mxu0 %v234
    %248 = vmatprep.subr.bf16.mxu0 0
    %249 = vmatpush1.bf16.msra.mxu0 %v233
    %250 = vmatprep.subr.bf16.mxu0 0
    %251 = vmatpush1.bf16.msra.mxu0 %v232
    %252 = vmatprep.subr.bf16.mxu0 0
    %253 = vmatpush1.bf16.msra.mxu0 %v231
    %254 = vmatprep.subr.bf16.mxu0 0
    %255 = vmatpush1.bf16.msra.mxu0 %v230
    %256 = vmatprep.subr.bf16.mxu0 0
    %257 = vmatpush1.bf16.msra.mxu0 %v229
    %258 = vmatprep.subr.bf16.mxu0 0
    %259 = vmatpush1.bf16.msra.mxu0 %v228
    %260 = vmatprep.subr.bf16.mxu0 0
    %261 = vmatpush2.bf16.msra.mxu0 0
    %262 = vmatprep.subr.bf16.mxu0 0
    %263 = vmatpush2.bf16.msra.mxu0 0
    %264 = vmatprep.subr.bf16.mxu0 0
    %265 = vmatpush2.bf16.msra.mxu0 0
    %266 = vmatprep.subr.bf16.mxu0 0
    %267 = vmatpush2.bf16.msra.mxu0 0
    %268 = vmatprep.subr.bf16.mxu0 0
    %269 = vmatpush2.bf16.msra.mxu0 0
    %270 = vmatprep.subr.bf16.mxu0 0
    %271 = vmatpush2.bf16.msra.mxu0 0
    %272 = vmatprep.subr.bf16.mxu0 0
    %273 = vmatpush2.bf16.msra.mxu0 0
    %274 = vmatprep.subr.bf16.mxu0 0
    %275 = vmatpush2.bf16.msra.mxu0 0
    %276 = vmatprep.mubr.bf16.mxu0 0
    %277 = vmatmul.mubr.bf16.gmra.mxu0 %v179
    %v278 = vpop.f32.mrf.mxu0
    %v279 = vadd.f32 0.0, %v278
    %v280 = vpop.f32.mrf.mxu0
    %v281 = vpop.f32.mrf.mxu0
    %v282 = vpop.f32.mrf.mxu0
    %283 = vdwg.mxu0
    %v284 = vrot.slane %v279, 4
    %v285 = vadd.f32 %v279, %v284
    %v286 = vrot.slane %v285, 2
    %v287 = vadd.f32 %v285, %v286
    %v288 = vrot.slane %v287, 1
    %v289 = vadd.f32 %v287, %v288
    %v290 = vmul.f32 %v289, %v146
    %v291 = vsub.f32 %v279, %v290
    %v292 = vmul.f32 %v291, %v291
    %v293 = vrot.slane %v292, 4
    %v294 = vadd.f32 %v292, %v293
    %v295 = vrot.slane %v294, 2
    %v296 = vadd.f32 %v294, %v295
    %v297 = vrot.slane %v296, 1
    %v298 = vadd.f32 %v296, %v297
    %v299 = vmul.f32 %v298, %v146
    %v300 = vld [vmem:[%s5] sm:$0x1]
    %v301 = vadd.f32 %v299, 1e-05
    %v302 = vrsqrt.pop %v301
    %v303 = vmul.f32 %v300, %v302
    %v304 = vld [vmem:[%s6] sm:$0x1]
    %v305 = vmul.f32 %v290, %v303
    %v306 = vsub.f32 %v304, %v305
    %v308 = vlaneseq
    %v309 = vshrl.u32 %v308, 7
    %v310 = vsub.s32 0, %v309
    %v311 = vrot.slane %v303, %v310
    %v313 = vmul.f32 %v279, %v311
    %v315 = vlaneseq
    %v316 = vshrl.u32 %v315, 7
    %v317 = vsub.s32 0, %v316
    %v318 = vrot.slane %v306, %v317
    %v320 = vadd.f32 %v313, %v318
    %v321 = vmax.f32 %v320, 0.0
    %v322 = vpack.c.bf16 %v321, %v321
    %v323 = vld [vmem:[%s7] sm:$0xf]
    %v324 = vld [vmem:[%s7 + $0x4] sm:$0xf]
    %v325 = vld [vmem:[%s7 + $0x8] sm:$0xf]
    %v326 = vld [vmem:[%s7 + $0xc] sm:$0xf]
    %v327 = vld [vmem:[%s7 + $0x10] sm:$0xf]
    %v328 = vld [vmem:[%s7 + $0x14] sm:$0xf]
    %v329 = vld [vmem:[%s7 + $0x18] sm:$0xf]
    %v330 = vld [vmem:[%s7 + $0x1c] sm:$0xf]
    %v331 = vld [vmem:[%s7 + $0x20] sm:$0xf]
    %v332 = vld [vmem:[%s7 + $0x24] sm:$0xf]
    %v333 = vld [vmem:[%s7 + $0x28] sm:$0xf]
    %v334 = vld [vmem:[%s7 + $0x2c] sm:$0xf]
    %v335 = vld [vmem:[%s7 + $0x30] sm:$0xf]
    %v336 = vld [vmem:[%s7 + $0x34] sm:$0xf]
    %v337 = vld [vmem:[%s7 + $0x38] sm:$0xf]
    %v338 = vld [vmem:[%s7 + $0x3c] sm:$0xf]
    %v339 = vld [vmem:[%s8] sm:$0x1]
    %v341 = vlaneseq
    %v342 = vshrl.u32 %v341, 7
    %v343 = vsub.s32 0, %v342
    %v344 = vrot.slane %v339, %v343
    %v362 = vunpack.c.l.b16 %v323
    %v363 = vunpack.c.l.b16 %v324
    %v364 = vunpack.c.l.b16 %v325
    %v365 = vunpack.c.l.b16 %v326
    %v366 = vunpack.c.l.b16 %v327
    %v367 = vunpack.c.l.b16 %v328
    %v368 = vunpack.c.l.b16 %v329
    %v369 = vunpack.c.l.b16 %v330
    %v370 = vunpack.c.l.b16 %v331
    %v371 = vunpack.c.l.b16 %v332
    %v372 = vunpack.c.l.b16 %v333
    %v373 = vunpack.c.l.b16 %v334
    %v374 = vunpack.c.l.b16 %v335
    %v375 = vunpack.c.l.b16 %v336
    %v376 = vunpack.c.l.b16 %v337
    %v377 = vunpack.c.l.b16 %v338
    %v378 = vpack.c.b16 %v363, %v362
    %v379 = vpack.c.b16 %v365, %v364
    %v380 = vpack.c.b16 %v367, %v366
    %v381 = vpack.c.b16 %v369, %v368
    %v382 = vpack.c.b16 %v371, %v370
    %v383 = vpack.c.b16 %v373, %v372
    %v384 = vpack.c.b16 %v375, %v374
    %v385 = vpack.c.b16 %v377, %v376
    %394 = vmatprep.subr.bf16.mxu0 0
    %395 = vmatpush1.bf16.msra.mxu0 %v385
    %396 = vmatprep.subr.bf16.mxu0 0
    %397 = vmatpush1.bf16.msra.mxu0 %v384
    %398 = vmatprep.subr.bf16.mxu0 0
    %399 = vmatpush1.bf16.msra.mxu0 %v383
    %400 = vmatprep.subr.bf16.mxu0 0
    %401 = vmatpush1.bf16.msra.mxu0 %v382
    %402 = vmatprep.subr.bf16.mxu0 0
    %403 = vmatpush1.bf16.msra.mxu0 %v381
    %404 = vmatprep.subr.bf16.mxu0 0
    %405 = vmatpush1.bf16.msra.mxu0 %v380
    %406 = vmatprep.subr.bf16.mxu0 0
    %407 = vmatpush1.bf16.msra.mxu0 %v379
    %408 = vmatprep.subr.bf16.mxu0 0
    %409 = vmatpush1.bf16.msra.mxu0 %v378
    %410 = vmatprep.subr.bf16.mxu0 0
    %411 = vmatpush2.bf16.msra.mxu0 0
    %412 = vmatprep.subr.bf16.mxu0 0
    %413 = vmatpush2.bf16.msra.mxu0 0
    %414 = vmatprep.subr.bf16.mxu0 0
    %415 = vmatpush2.bf16.msra.mxu0 0
    %416 = vmatprep.subr.bf16.mxu0 0
    %417 = vmatpush2.bf16.msra.mxu0 0
    %418 = vmatprep.subr.bf16.mxu0 0
    %419 = vmatpush2.bf16.msra.mxu0 0
    %420 = vmatprep.subr.bf16.mxu0 0
    %421 = vmatpush2.bf16.msra.mxu0 0
    %422 = vmatprep.subr.bf16.mxu0 0
    %423 = vmatpush2.bf16.msra.mxu0 0
    %424 = vmatprep.subr.bf16.mxu0 0
    %425 = vmatpush2.bf16.msra.mxu0 0
    %426 = vmatprep.mubr.bf16.mxu0 0
    %427 = vmatmul.mubr.bf16.gmra.mxu0 %v322
    %v428 = vpop.f32.mrf.mxu0
    %v429 = vadd.f32 %v344, %v428
    %v430 = vpop.f32.mrf.mxu0
    %v431 = vpop.f32.mrf.mxu0
    %v432 = vpop.f32.mrf.mxu0
    %433 = vdwg.mxu0
    %v434 = vmul.f32 %v429, %v429
    %435 = vadd.xlane.f32.xlu0 %v434
    %v436 = vpop.xlane.xlu0 %435
    %v437 = vmax.f32 %v436, 1e-24
    %v438 = vrsqrt.pop %v437
    %v439 = vmul.f32 %v429, %v438
    %440 = vst [vmem:[#allocation2] sm:$0xff] %v439
    // Predicated region
    $region38: #{_lambda_.3} parent=1 // pred_check
      _
    $region39: #{_lambda_.3} parent=1 // pred_check_branch
      %442 = sbr.rel (0) target = $region41
    $region40: #{_lambda_.3} parent=1 // pred_region
      %s444 = ssub.s32 128, 128
      %445 = vsyncadd [#allocation3], %s444
      %s447 = sshll.u32 [#allocation2], 4
      %s448 = int_to_ptr.vmem [resolvable:$true] %s447
      %450 = dma.vmem_to_hbm [thread:$0]  %s448, 128, %s9, [#allocation3]
    $region41: #{_lambda_.3} parent=1 // pred_fallthru
      _
    // Predicated region
    $region42: #{_lambda_.3} parent=1 // pred_check
      _
    $region43: #{_lambda_.3} parent=1 // pred_check_branch
      %452 = sbr.rel (0) target = $region45
    $region44: #{_lambda_.3} parent=1 // pred_region
      %453 = dma.done [#allocation3], 128
    $region45: #{_lambda_.3} parent=1 // pred_fallthru
      _
    %454 = vsyncpa [#allocation3], 1

// kernel: _lambda_.2
$region0: #{_lambda_.2}
  #allocation0 [shape = 'u32[]', space=smem, size = 0x4, offset = 0x4, fixed_abs, tag = 'smem constant byte address 0x4 - core index']
  #allocation1 [shape = 'u32[144,128]{1,0:T(1,128)}', space=vmem, size = 0x12000, scoped, tag = 'internal scratch']
  %s0 = inlined_call_operand.vmem [shape: bf16[2048,128], index: 0, kind: input, shape index: {}]
  %s1 = inlined_call_operand.vmem [shape: bf16[128,128], index: 1, kind: input, shape index: {}]
  %s2 = inlined_call_operand.vmem [shape: f32[1,128], index: 2, kind: input, shape index: {}]
  %s3 = inlined_call_operand.vmem [shape: f32[8,128], index: 3, kind: output, shape index: {}]
  %s4 = sld [smem:[#allocation0]]
  $region22: #{_lambda_.2} parent=0
    _
  %s6 = ssub.s32 1, %s4
  %s7 = scalar_select 0, %s6, %s4
  // Predicated region
  $region2: #{_lambda_.2} parent=0 // pred_check
    _
  $region3: #{_lambda_.2} parent=0 // pred_check_branch
    %9 = sbr.rel (0) target = $region5
  $region4: #{_lambda_.2} parent=0 // pred_region
    _
  $region5: #{_lambda_.2} parent=0 // pred_fallthru
    _
  // Predicated region
  $region6: #{_lambda_.2} parent=0 // pred_check
    _
  $region7: #{_lambda_.2} parent=0 // pred_check_branch
    %11 = sbr.rel (0) target = $region9
  $region8: #{_lambda_.2} parent=0 // pred_region
    _
  $region9: #{_lambda_.2} parent=0 // pred_fallthru
    _
  // Predicated region
  $region10: #{_lambda_.2} parent=0 // pred_check
    _
  $region11: #{_lambda_.2} parent=0 // pred_check_branch
    %13 = sbr.rel (0) target = $region13
  $region12: #{_lambda_.2} parent=0 // pred_region
    _
  $region13: #{_lambda_.2} parent=0 // pred_fallthru
    _
  %v15 = vld [vmem:[%s0] sm:$0xf]
  %v16 = vld [vmem:[%s0 + $0x4] sm:$0xf]
  %v17 = vld [vmem:[%s0 + $0x8] sm:$0xf]
  %v18 = vld [vmem:[%s0 + $0xc] sm:$0xf]
  %v19 = vld [vmem:[%s0 + $0x10] sm:$0xf]
  %v20 = vld [vmem:[%s0 + $0x14] sm:$0xf]
  %v21 = vld [vmem:[%s0 + $0x18] sm:$0xf]
  %v22 = vld [vmem:[%s0 + $0x1c] sm:$0xf]
  %v23 = vld [vmem:[%s0 + $0x20] sm:$0xf]
  %v24 = vld [vmem:[%s0 + $0x24] sm:$0xf]
  %v25 = vld [vmem:[%s0 + $0x28] sm:$0xf]
  %v26 = vld [vmem:[%s0 + $0x2c] sm:$0xf]
  %v27 = vld [vmem:[%s0 + $0x30] sm:$0xf]
  %v28 = vld [vmem:[%s0 + $0x34] sm:$0xf]
  %v29 = vld [vmem:[%s0 + $0x38] sm:$0xf]
  %v30 = vld [vmem:[%s0 + $0x3c] sm:$0xf]
  %v31 = vld [vmem:[%s0 + $0x40] sm:$0xf]
  %v32 = vld [vmem:[%s0 + $0x44] sm:$0xf]
  %v33 = vld [vmem:[%s0 + $0x48] sm:$0xf]
  %v34 = vld [vmem:[%s0 + $0x4c] sm:$0xf]
  %v35 = vld [vmem:[%s0 + $0x50] sm:$0xf]
  %v36 = vld [vmem:[%s0 + $0x54] sm:$0xf]
  %v37 = vld [vmem:[%s0 + $0x58] sm:$0xf]
  %v38 = vld [vmem:[%s0 + $0x5c] sm:$0xf]
  %v39 = vld [vmem:[%s0 + $0x60] sm:$0xf]
  %v40 = vld [vmem:[%s0 + $0x64] sm:$0xf]
  %v41 = vld [vmem:[%s0 + $0x68] sm:$0xf]
  %v42 = vld [vmem:[%s0 + $0x6c] sm:$0xf]
  %v43 = vld [vmem:[%s0 + $0x70] sm:$0xf]
  %v44 = vld [vmem:[%s0 + $0x74] sm:$0xf]
  %v45 = vld [vmem:[%s0 + $0x78] sm:$0xf]
  %v46 = vld [vmem:[%s0 + $0x7c] sm:$0xf]
  %v47 = vld [vmem:[%s0 + $0x80] sm:$0xf]
  %v48 = vld [vmem:[%s0 + $0x84] sm:$0xf]
  %v49 = vld [vmem:[%s0 + $0x88] sm:$0xf]
  %v50 = vld [vmem:[%s0 + $0x8c] sm:$0xf]
  %v51 = vld [vmem:[%s0 + $0x90] sm:$0xf]
  %v52 = vld [vmem:[%s0 + $0x94] sm:$0xf]
  %v53 = vld [vmem:[%s0 + $0x98] sm:$0xf]
  %v54 = vld [vmem:[%s0 + $0x9c] sm:$0xf]
  %v55 = vld [vmem:[%s0 + $0xa0] sm:$0xf]
  %v56 = vld [vmem:[%s0 + $0xa4] sm:$0xf]
  %v57 = vld [vmem:[%s0 + $0xa8] sm:$0xf]
  %v58 = vld [vmem:[%s0 + $0xac] sm:$0xf]
  %v59 = vld [vmem:[%s0 + $0xb0] sm:$0xf]
  %v60 = vld [vmem:[%s0 + $0xb4] sm:$0xf]
  %v61 = vld [vmem:[%s0 + $0xb8] sm:$0xf]
  %v62 = vld [vmem:[%s0 + $0xbc] sm:$0xf]
  %v63 = vld [vmem:[%s0 + $0xc0] sm:$0xf]
  %v64 = vld [vmem:[%s0 + $0xc4] sm:$0xf]
  %v65 = vld [vmem:[%s0 + $0xc8] sm:$0xf]
  %v66 = vld [vmem:[%s0 + $0xcc] sm:$0xf]
  %v67 = vld [vmem:[%s0 + $0xd0] sm:$0xf]
  %v68 = vld [vmem:[%s0 + $0xd4] sm:$0xf]
  %v69 = vld [vmem:[%s0 + $0xd8] sm:$0xf]
  %v70 = vld [vmem:[%s0 + $0xdc] sm:$0xf]
  %v71 = vld [vmem:[%s0 + $0xe0] sm:$0xf]
  %v72 = vld [vmem:[%s0 + $0xe4] sm:$0xf]
  %v73 = vld [vmem:[%s0 + $0xe8] sm:$0xf]
  %v74 = vld [vmem:[%s0 + $0xec] sm:$0xf]
  %v75 = vld [vmem:[%s0 + $0xf0] sm:$0xf]
  %v76 = vld [vmem:[%s0 + $0xf4] sm:$0xf]
  %v77 = vld [vmem:[%s0 + $0xf8] sm:$0xf]
  %v78 = vld [vmem:[%s0 + $0xfc] sm:$0xf]
  %v79 = vld [vmem:[%s0 + $0x100] sm:$0xf]
  %v80 = vld [vmem:[%s0 + $0x104] sm:$0xf]
  %v81 = vld [vmem:[%s0 + $0x108] sm:$0xf]
  %v82 = vld [vmem:[%s0 + $0x10c] sm:$0xf]
  %v83 = vld [vmem:[%s0 + $0x110] sm:$0xf]
  %v84 = vld [vmem:[%s0 + $0x114] sm:$0xf]
  %v85 = vld [vmem:[%s0 + $0x118] sm:$0xf]
  %v86 = vld [vmem:[%s0 + $0x11c] sm:$0xf]
  %v87 = vld [vmem:[%s0 + $0x120] sm:$0xf]
  %v88 = vld [vmem:[%s0 + $0x124] sm:$0xf]
  %v89 = vld [vmem:[%s0 + $0x128] sm:$0xf]
  %v90 = vld [vmem:[%s0 + $0x12c] sm:$0xf]
  %v91 = vld [vmem:[%s0 + $0x130] sm:$0xf]
  %v92 = vld [vmem:[%s0 + $0x134] sm:$0xf]
  %v93 = vld [vmem:[%s0 + $0x138] sm:$0xf]
  %v94 = vld [vmem:[%s0 + $0x13c] sm:$0xf]
  %v95 = vld [vmem:[%s0 + $0x140] sm:$0xf]
  %v96 = vld [vmem:[%s0 + $0x144] sm:$0xf]
  %v97 = vld [vmem:[%s0 + $0x148] sm:$0xf]
  %v98 = vld [vmem:[%s0 + $0x14c] sm:$0xf]
  %v99 = vld [vmem:[%s0 + $0x150] sm:$0xf]
  %v100 = vld [vmem:[%s0 + $0x154] sm:$0xf]
  %v101 = vld [vmem:[%s0 + $0x158] sm:$0xf]
  %v102 = vld [vmem:[%s0 + $0x15c] sm:$0xf]
  %v103 = vld [vmem:[%s0 + $0x160] sm:$0xf]
  %v104 = vld [vmem:[%s0 + $0x164] sm:$0xf]
  %v105 = vld [vmem:[%s0 + $0x168] sm:$0xf]
  %v106 = vld [vmem:[%s0 + $0x16c] sm:$0xf]
  %v107 = vld [vmem:[%s0 + $0x170] sm:$0xf]
  %v108 = vld [vmem:[%s0 + $0x174] sm:$0xf]
  %v109 = vld [vmem:[%s0 + $0x178] sm:$0xf]
  %v110 = vld [vmem:[%s0 + $0x17c] sm:$0xf]
  %v111 = vld [vmem:[%s0 + $0x180] sm:$0xf]
  %v112 = vld [vmem:[%s0 + $0x184] sm:$0xf]
  %v113 = vld [vmem:[%s0 + $0x188] sm:$0xf]
  %v114 = vld [vmem:[%s0 + $0x18c] sm:$0xf]
  %v115 = vld [vmem:[%s0 + $0x190] sm:$0xf]
  %v116 = vld [vmem:[%s0 + $0x194] sm:$0xf]
  %v117 = vld [vmem:[%s0 + $0x198] sm:$0xf]
  %v118 = vld [vmem:[%s0 + $0x19c] sm:$0xf]
  %v119 = vld [vmem:[%s0 + $0x1a0] sm:$0xf]
  %v120 = vld [vmem:[%s0 + $0x1a4] sm:$0xf]
  %v121 = vld [vmem:[%s0 + $0x1a8] sm:$0xf]
  %v122 = vld [vmem:[%s0 + $0x1ac] sm:$0xf]
  %v123 = vld [vmem:[%s0 + $0x1b0] sm:$0xf]
  %v124 = vld [vmem:[%s0 + $0x1b4] sm:$0xf]
  %v125 = vld [vmem:[%s0 + $0x1b8] sm:$0xf]
  %v126 = vld [vmem:[%s0 + $0x1bc] sm:$0xf]
  %v127 = vld [vmem:[%s0 + $0x1c0] sm:$0xf]
  %v128 = vld [vmem:[%s0 + $0x1c4] sm:$0xf]
  %v129 = vld [vmem:[%s0 + $0x1c8] sm:$0xf]
  %v130 = vld [vmem:[%s0 + $0x1cc] sm:$0xf]
  %v131 = vld [vmem:[%s0 + $0x1d0] sm:$0xf]
  %v132 = vld [vmem:[%s0 + $0x1d4] sm:$0xf]
  %v133 = vld [vmem:[%s0 + $0x1d8] sm:$0xf]
  %v134 = vld [vmem:[%s0 + $0x1dc] sm:$0xf]
  %v135 = vld [vmem:[%s0 + $0x1e0] sm:$0xf]
  %v136 = vld [vmem:[%s0 + $0x1e4] sm:$0xf]
  %v137 = vld [vmem:[%s0 + $0x1e8] sm:$0xf]
  %v138 = vld [vmem:[%s0 + $0x1ec] sm:$0xf]
  %v139 = vld [vmem:[%s0 + $0x1f0] sm:$0xf]
  %v140 = vld [vmem:[%s0 + $0x1f4] sm:$0xf]
  %v141 = vld [vmem:[%s0 + $0x1f8] sm:$0xf]
  %v142 = vld [vmem:[%s0 + $0x1fc] sm:$0xf]
  %v143 = vld [vmem:[%s0 + $0x200] sm:$0xf]
  %v144 = vld [vmem:[%s0 + $0x204] sm:$0xf]
  %v145 = vld [vmem:[%s0 + $0x208] sm:$0xf]
  %v146 = vld [vmem:[%s0 + $0x20c] sm:$0xf]
  %v147 = vld [vmem:[%s0 + $0x210] sm:$0xf]
  %v148 = vld [vmem:[%s0 + $0x214] sm:$0xf]
  %v149 = vld [vmem:[%s0 + $0x218] sm:$0xf]
  %v150 = vld [vmem:[%s0 + $0x21c] sm:$0xf]
  %v151 = vld [vmem:[%s0 + $0x220] sm:$0xf]
  %v152 = vld [vmem:[%s0 + $0x224] sm:$0xf]
  %v153 = vld [vmem:[%s0 + $0x228] sm:$0xf]
  %v154 = vld [vmem:[%s0 + $0x22c] sm:$0xf]
  %v155 = vld [vmem:[%s0 + $0x230] sm:$0xf]
  %v156 = vld [vmem:[%s0 + $0x234] sm:$0xf]
  %v157 = vld [vmem:[%s0 + $0x238] sm:$0xf]
  %v158 = vld [vmem:[%s0 + $0x23c] sm:$0xf]
  %v159 = vld [vmem:[%s0 + $0x240] sm:$0xf]
  %v160 = vld [vmem:[%s0 + $0x244] sm:$0xf]
  %v161 = vld [vmem:[%s0 + $0x248] sm:$0xf]
  %v162 = vld [vmem:[%s0 + $0x24c] sm:$0xf]
  %v163 = vld [vmem:[%s0 + $0x250] sm:$0xf]
  %v164 = vld [vmem:[%s0 + $0x254] sm:$0xf]
  %v165 = vld [vmem:[%s0 + $0x258] sm:$0xf]
  %v166 = vld [vmem:[%s0 + $0x25c] sm:$0xf]
  %v167 = vld [vmem:[%s0 + $0x260] sm:$0xf]
  %v168 = vld [vmem:[%s0 + $0x264] sm:$0xf]
  %v169 = vld [vmem:[%s0 + $0x268] sm:$0xf]
  %v170 = vld [vmem:[%s0 + $0x26c] sm:$0xf]
  %v171 = vld [vmem:[%s0 + $0x270] sm:$0xf]
  %v172 = vld [vmem:[%s0 + $0x274] sm:$0xf]
  %v173 = vld [vmem:[%s0 + $0x278] sm:$0xf]
  %v174 = vld [vmem:[%s0 + $0x27c] sm:$0xf]
  %v175 = vld [vmem:[%s0 + $0x280] sm:$0xf]
  %v176 = vld [vmem:[%s0 + $0x284] sm:$0xf]
  %v177 = vld [vmem:[%s0 + $0x288] sm:$0xf]
  %v178 = vld [vmem:[%s0 + $0x28c] sm:$0xf]
  %v179 = vld [vmem:[%s0 + $0x290] sm:$0xf]
  %v180 = vld [vmem:[%s0 + $0x294] sm:$0xf]
  %v181 = vld [vmem:[%s0 + $0x298] sm:$0xf]
  %v182 = vld [vmem:[%s0 + $0x29c] sm:$0xf]
  %v183 = vld [vmem:[%s0 + $0x2a0] sm:$0xf]
  %v184 = vld [vmem:[%s0 + $0x2a4] sm:$0xf]
  %v185 = vld [vmem:[%s0 + $0x2a8] sm:$0xf]
  %v186 = vld [vmem:[%s0 + $0x2ac] sm:$0xf]
  %v187 = vld [vmem:[%s0 + $0x2b0] sm:$0xf]
  %v188 = vld [vmem:[%s0 + $0x2b4] sm:$0xf]
  %v189 = vld [vmem:[%s0 + $0x2b8] sm:$0xf]
  %v190 = vld [vmem:[%s0 + $0x2bc] sm:$0xf]
  %v191 = vld [vmem:[%s0 + $0x2c0] sm:$0xf]
  %v192 = vld [vmem:[%s0 + $0x2c4] sm:$0xf]
  %v193 = vld [vmem:[%s0 + $0x2c8] sm:$0xf]
  %v194 = vld [vmem:[%s0 + $0x2cc] sm:$0xf]
  %v195 = vld [vmem:[%s0 + $0x2d0] sm:$0xf]
  %v196 = vld [vmem:[%s0 + $0x2d4] sm:$0xf]
  %v197 = vld [vmem:[%s0 + $0x2d8] sm:$0xf]
  %v198 = vld [vmem:[%s0 + $0x2dc] sm:$0xf]
  %v199 = vld [vmem:[%s0 + $0x2e0] sm:$0xf]
  %v200 = vld [vmem:[%s0 + $0x2e4] sm:$0xf]
  %v201 = vld [vmem:[%s0 + $0x2e8] sm:$0xf]
  %v202 = vld [vmem:[%s0 + $0x2ec] sm:$0xf]
  %v203 = vld [vmem:[%s0 + $0x2f0] sm:$0xf]
  %v204 = vld [vmem:[%s0 + $0x2f4] sm:$0xf]
  %v205 = vld [vmem:[%s0 + $0x2f8] sm:$0xf]
  %v206 = vld [vmem:[%s0 + $0x2fc] sm:$0xf]
  %v207 = vld [vmem:[%s0 + $0x300] sm:$0xf]
  %v208 = vld [vmem:[%s0 + $0x304] sm:$0xf]
  %v209 = vld [vmem:[%s0 + $0x308] sm:$0xf]
  %v210 = vld [vmem:[%s0 + $0x30c] sm:$0xf]
  %v211 = vld [vmem:[%s0 + $0x310] sm:$0xf]
  %v212 = vld [vmem:[%s0 + $0x314] sm:$0xf]
  %v213 = vld [vmem:[%s0 + $0x318] sm:$0xf]
  %v214 = vld [vmem:[%s0 + $0x31c] sm:$0xf]
  %v215 = vld [vmem:[%s0 + $0x320] sm:$0xf]
  %v216 = vld [vmem:[%s0 + $0x324] sm:$0xf]
  %v217 = vld [vmem:[%s0 + $0x328] sm:$0xf]
  %v218 = vld [vmem:[%s0 + $0x32c] sm:$0xf]
  %v219 = vld [vmem:[%s0 + $0x330] sm:$0xf]
  %v220 = vld [vmem:[%s0 + $0x334] sm:$0xf]
  %v221 = vld [vmem:[%s0 + $0x338] sm:$0xf]
  %v222 = vld [vmem:[%s0 + $0x33c] sm:$0xf]
  %v223 = vld [vmem:[%s0 + $0x340] sm:$0xf]
  %v224 = vld [vmem:[%s0 + $0x344] sm:$0xf]
  %v225 = vld [vmem:[%s0 + $0x348] sm:$0xf]
  %v226 = vld [vmem:[%s0 + $0x34c] sm:$0xf]
  %v227 = vld [vmem:[%s0 + $0x350] sm:$0xf]
  %v228 = vld [vmem:[%s0 + $0x354] sm:$0xf]
  %v229 = vld [vmem:[%s0 + $0x358] sm:$0xf]
  %v230 = vld [vmem:[%s0 + $0x35c] sm:$0xf]
  %v231 = vld [vmem:[%s0 + $0x360] sm:$0xf]
  %v232 = vld [vmem:[%s0 + $0x364] sm:$0xf]
  %v233 = vld [vmem:[%s0 + $0x368] sm:$0xf]
  %v234 = vld [vmem:[%s0 + $0x36c] sm:$0xf]
  %v235 = vld [vmem:[%s0 + $0x370] sm:$0xf]
  %v236 = vld [vmem:[%s0 + $0x374] sm:$0xf]
  %v237 = vld [vmem:[%s0 + $0x378] sm:$0xf]
  %v238 = vld [vmem:[%s0 + $0x37c] sm:$0xf]
  %v239 = vld [vmem:[%s0 + $0x380] sm:$0xf]
  %v240 = vld [vmem:[%s0 + $0x384] sm:$0xf]
  %v241 = vld [vmem:[%s0 + $0x388] sm:$0xf]
  %v242 = vld [vmem:[%s0 + $0x38c] sm:$0xf]
  %v243 = vld [vmem:[%s0 + $0x390] sm:$0xf]
  %v244 = vld [vmem:[%s0 + $0x394] sm:$0xf]
  %v245 = vld [vmem:[%s0 + $0x398] sm:$0xf]
  %v246 = vld [vmem:[%s0 + $0x39c] sm:$0xf]
  %v247 = vld [vmem:[%s0 + $0x3a0] sm:$0xf]
  %v248 = vld [vmem:[%s0 + $0x3a4] sm:$0xf]
  %v249 = vld [vmem:[%s0 + $0x3a8] sm:$0xf]
  %v250 = vld [vmem:[%s0 + $0x3ac] sm:$0xf]
  %v251 = vld [vmem:[%s0 + $0x3b0] sm:$0xf]
  %v252 = vld [vmem:[%s0 + $0x3b4] sm:$0xf]
  %v253 = vld [vmem:[%s0 + $0x3b8] sm:$0xf]
  %v254 = vld [vmem:[%s0 + $0x3bc] sm:$0xf]
  %v255 = vld [vmem:[%s0 + $0x3c0] sm:$0xf]
  %v256 = vld [vmem:[%s0 + $0x3c4] sm:$0xf]
  %v257 = vld [vmem:[%s0 + $0x3c8] sm:$0xf]
  %v258 = vld [vmem:[%s0 + $0x3cc] sm:$0xf]
  %v259 = vld [vmem:[%s0 + $0x3d0] sm:$0xf]
  %v260 = vld [vmem:[%s0 + $0x3d4] sm:$0xf]
  %v261 = vld [vmem:[%s0 + $0x3d8] sm:$0xf]
  %v262 = vld [vmem:[%s0 + $0x3dc] sm:$0xf]
  %v263 = vld [vmem:[%s0 + $0x3e0] sm:$0xf]
  %v264 = vld [vmem:[%s0 + $0x3e4] sm:$0xf]
  %v265 = vld [vmem:[%s0 + $0x3e8] sm:$0xf]
  %v266 = vld [vmem:[%s0 + $0x3ec] sm:$0xf]
  %v267 = vld [vmem:[%s0 + $0x3f0] sm:$0xf]
  %v268 = vld [vmem:[%s0 + $0x3f4] sm:$0xf]
  %v269 = vld [vmem:[%s0 + $0x3f8] sm:$0xf]
  %v270 = vld [vmem:[%s0 + $0x3fc] sm:$0xf]
  %v271 = vld [vmem:[%s1] sm:$0xf]
  %v272 = vld [vmem:[%s1 + $0x4] sm:$0xf]
  %v273 = vld [vmem:[%s1 + $0x8] sm:$0xf]
  %v274 = vld [vmem:[%s1 + $0xc] sm:$0xf]
  %v275 = vld [vmem:[%s1 + $0x10] sm:$0xf]
  %v276 = vld [vmem:[%s1 + $0x14] sm:$0xf]
  %v277 = vld [vmem:[%s1 + $0x18] sm:$0xf]
  %v278 = vld [vmem:[%s1 + $0x1c] sm:$0xf]
  %v279 = vld [vmem:[%s1 + $0x20] sm:$0xf]
  %v280 = vld [vmem:[%s1 + $0x24] sm:$0xf]
  %v281 = vld [vmem:[%s1 + $0x28] sm:$0xf]
  %v282 = vld [vmem:[%s1 + $0x2c] sm:$0xf]
  %v283 = vld [vmem:[%s1 + $0x30] sm:$0xf]
  %v284 = vld [vmem:[%s1 + $0x34] sm:$0xf]
  %v285 = vld [vmem:[%s1 + $0x38] sm:$0xf]
  %v286 = vld [vmem:[%s1 + $0x3c] sm:$0xf]
  %v287 = vld [vmem:[%s2] sm:$0x1]
  %v289 = vlaneseq
  %v290 = vshrl.u32 %v289, 7
  %v291 = vsub.s32 0, %v290
  %v292 = vrot.slane %v287, %v291
  %v550 = vunpack.c.l.b16 %v15
  %v551 = vunpack.c.l.b16 %v16
  %v552 = vunpack.c.l.b16 %v17
  %v553 = vunpack.c.l.b16 %v18
  %v554 = vunpack.c.l.b16 %v19
  %v555 = vunpack.c.l.b16 %v20
  %v556 = vunpack.c.l.b16 %v21
  %v557 = vunpack.c.l.b16 %v22
  %v558 = vunpack.c.l.b16 %v23
  %v559 = vunpack.c.l.b16 %v24
  %v560 = vunpack.c.l.b16 %v25
  %v561 = vunpack.c.l.b16 %v26
  %v562 = vunpack.c.l.b16 %v27
  %v563 = vunpack.c.l.b16 %v28
  %v564 = vunpack.c.l.b16 %v29
  %v565 = vunpack.c.l.b16 %v30
  %v566 = vunpack.c.l.b16 %v31
  %v567 = vunpack.c.l.b16 %v32
  %v568 = vunpack.c.l.b16 %v33
  %v569 = vunpack.c.l.b16 %v34
  %v570 = vunpack.c.l.b16 %v35
  %v571 = vunpack.c.l.b16 %v36
  %v572 = vunpack.c.l.b16 %v37
  %v573 = vunpack.c.l.b16 %v38
  %v574 = vunpack.c.l.b16 %v39
  %v575 = vunpack.c.l.b16 %v40
  %v576 = vunpack.c.l.b16 %v41
  %v577 = vunpack.c.l.b16 %v42
  %v578 = vunpack.c.l.b16 %v43
  %v579 = vunpack.c.l.b16 %v44
  %v580 = vunpack.c.l.b16 %v45
  %v581 = vunpack.c.l.b16 %v46
  %v582 = vunpack.c.l.b16 %v47
  %v583 = vunpack.c.l.b16 %v48
  %v584 = vunpack.c.l.b16 %v49
  %v585 = vunpack.c.l.b16 %v50
  %v586 = vunpack.c.l.b16 %v51
  %v587 = vunpack.c.l.b16 %v52
  %v588 = vunpack.c.l.b16 %v53
  %v589 = vunpack.c.l.b16 %v54
  %v590 = vunpack.c.l.b16 %v55
  %v591 = vunpack.c.l.b16 %v56
  %v592 = vunpack.c.l.b16 %v57
  %v593 = vunpack.c.l.b16 %v58
  %v594 = vunpack.c.l.b16 %v59
  %v595 = vunpack.c.l.b16 %v60
  %v596 = vunpack.c.l.b16 %v61
  %v597 = vunpack.c.l.b16 %v62
  %v598 = vunpack.c.l.b16 %v63
  %v599 = vunpack.c.l.b16 %v64
  %v600 = vunpack.c.l.b16 %v65
  %v601 = vunpack.c.l.b16 %v66
  %v602 = vunpack.c.l.b16 %v67
  %v603 = vunpack.c.l.b16 %v68
  %v604 = vunpack.c.l.b16 %v69
  %v605 = vunpack.c.l.b16 %v70
  %v606 = vunpack.c.l.b16 %v71
  %v607 = vunpack.c.l.b16 %v72
  %v608 = vunpack.c.l.b16 %v73
  %v609 = vunpack.c.l.b16 %v74
  %v610 = vunpack.c.l.b16 %v75
  %v611 = vunpack.c.l.b16 %v76
  %v612 = vunpack.c.l.b16 %v77
  %v613 = vunpack.c.l.b16 %v78
  %v614 = vunpack.c.l.b16 %v79
  %v615 = vunpack.c.l.b16 %v80
  %v616 = vunpack.c.l.b16 %v81
  %v617 = vunpack.c.l.b16 %v82
  %v618 = vunpack.c.l.b16 %v83
  %v619 = vunpack.c.l.b16 %v84
  %v620 = vunpack.c.l.b16 %v85
  %v621 = vunpack.c.l.b16 %v86
  %v622 = vunpack.c.l.b16 %v87
  %v623 = vunpack.c.l.b16 %v88
  %v624 = vunpack.c.l.b16 %v89
  %v625 = vunpack.c.l.b16 %v90
  %v626 = vunpack.c.l.b16 %v91
  %v627 = vunpack.c.l.b16 %v92
  %v628 = vunpack.c.l.b16 %v93
  %v629 = vunpack.c.l.b16 %v94
  %v630 = vunpack.c.l.b16 %v95
  %v631 = vunpack.c.l.b16 %v96
  %v632 = vunpack.c.l.b16 %v97
  %v633 = vunpack.c.l.b16 %v98
  %v634 = vunpack.c.l.b16 %v99
  %v635 = vunpack.c.l.b16 %v100
  %v636 = vunpack.c.l.b16 %v101
  %v637 = vunpack.c.l.b16 %v102
  %v638 = vunpack.c.l.b16 %v103
  %v639 = vunpack.c.l.b16 %v104
  %v640 = vunpack.c.l.b16 %v105
  %v641 = vunpack.c.l.b16 %v106
  %v642 = vunpack.c.l.b16 %v107
  %v643 = vunpack.c.l.b16 %v108
  %v644 = vunpack.c.l.b16 %v109
  %v645 = vunpack.c.l.b16 %v110
  %v646 = vunpack.c.l.b16 %v111
  %v647 = vunpack.c.l.b16 %v112
  %v648 = vunpack.c.l.b16 %v113
  %v649 = vunpack.c.l.b16 %v114
  %v650 = vunpack.c.l.b16 %v115
  %v651 = vunpack.c.l.b16 %v116
  %v652 = vunpack.c.l.b16 %v117
  %v653 = vunpack.c.l.b16 %v118
  %v654 = vunpack.c.l.b16 %v119
  %v655 = vunpack.c.l.b16 %v120
  %v656 = vunpack.c.l.b16 %v121
  %v657 = vunpack.c.l.b16 %v122
  %v658 = vunpack.c.l.b16 %v123
  %v659 = vunpack.c.l.b16 %v124
  %v660 = vunpack.c.l.b16 %v125
  %v661 = vunpack.c.l.b16 %v126
  %v662 = vunpack.c.l.b16 %v127
  %v663 = vunpack.c.l.b16 %v128
  %v664 = vunpack.c.l.b16 %v129
  %v665 = vunpack.c.l.b16 %v130
  %v666 = vunpack.c.l.b16 %v131
  %v667 = vunpack.c.l.b16 %v132
  %v668 = vunpack.c.l.b16 %v133
  %v669 = vunpack.c.l.b16 %v134
  %v670 = vunpack.c.l.b16 %v135
  %v671 = vunpack.c.l.b16 %v136
  %v672 = vunpack.c.l.b16 %v137
  %v673 = vunpack.c.l.b16 %v138
  %v674 = vunpack.c.l.b16 %v139
  %v675 = vunpack.c.l.b16 %v140
  %v676 = vunpack.c.l.b16 %v141
  %v677 = vunpack.c.l.b16 %v142
  %v678 = vunpack.c.l.b16 %v143
  %v679 = vunpack.c.l.b16 %v144
  %v680 = vunpack.c.l.b16 %v145
  %v681 = vunpack.c.l.b16 %v146
  %v682 = vunpack.c.l.b16 %v147
  %v683 = vunpack.c.l.b16 %v148
  %v684 = vunpack.c.l.b16 %v149
  %v685 = vunpack.c.l.b16 %v150
  %v686 = vunpack.c.l.b16 %v151
  %v687 = vunpack.c.l.b16 %v152
  %v688 = vunpack.c.l.b16 %v153
  %v689 = vunpack.c.l.b16 %v154
  %v690 = vunpack.c.l.b16 %v155
  %v691 = vunpack.c.l.b16 %v156
  %v692 = vunpack.c.l.b16 %v157
  %v693 = vunpack.c.l.b16 %v158
  %v694 = vunpack.c.l.b16 %v159
  %v695 = vunpack.c.l.b16 %v160
  %v696 = vunpack.c.l.b16 %v161
  %v697 = vunpack.c.l.b16 %v162
  %v698 = vunpack.c.l.b16 %v163
  %v699 = vunpack.c.l.b16 %v164
  %v700 = vunpack.c.l.b16 %v165
  %v701 = vunpack.c.l.b16 %v166
  %v702 = vunpack.c.l.b16 %v167
  %v703 = vunpack.c.l.b16 %v168
  %v704 = vunpack.c.l.b16 %v169
  %v705 = vunpack.c.l.b16 %v170
  %v706 = vunpack.c.l.b16 %v171
  %v707 = vunpack.c.l.b16 %v172
  %v708 = vunpack.c.l.b16 %v173
  %v709 = vunpack.c.l.b16 %v174
  %v710 = vunpack.c.l.b16 %v175
  %v711 = vunpack.c.l.b16 %v176
  %v712 = vunpack.c.l.b16 %v177
  %v713 = vunpack.c.l.b16 %v178
  %v714 = vunpack.c.l.b16 %v179
  %v715 = vunpack.c.l.b16 %v180
  %v716 = vunpack.c.l.b16 %v181
  %v717 = vunpack.c.l.b16 %v182
  %v718 = vunpack.c.l.b16 %v183
  %v719 = vunpack.c.l.b16 %v184
  %v720 = vunpack.c.l.b16 %v185
  %v721 = vunpack.c.l.b16 %v186
  %v722 = vunpack.c.l.b16 %v187
  %v723 = vunpack.c.l.b16 %v188
  %v724 = vunpack.c.l.b16 %v189
  %v725 = vunpack.c.l.b16 %v190
  %v726 = vunpack.c.l.b16 %v191
  %v727 = vunpack.c.l.b16 %v192
  %v728 = vunpack.c.l.b16 %v193
  %v729 = vunpack.c.l.b16 %v194
  %v730 = vunpack.c.l.b16 %v195
  %v731 = vunpack.c.l.b16 %v196
  %v732 = vunpack.c.l.b16 %v197
  %v733 = vunpack.c.l.b16 %v198
  %v734 = vunpack.c.l.b16 %v199
  %v735 = vunpack.c.l.b16 %v200
  %v736 = vunpack.c.l.b16 %v201
  %v737 = vunpack.c.l.b16 %v202
  %v738 = vunpack.c.l.b16 %v203
  %v739 = vunpack.c.l.b16 %v204
  %v740 = vunpack.c.l.b16 %v205
  %v741 = vunpack.c.l.b16 %v206
  %v742 = vunpack.c.l.b16 %v207
  %v743 = vunpack.c.l.b16 %v208
  %v744 = vunpack.c.l.b16 %v209
  %v745 = vunpack.c.l.b16 %v210
  %v746 = vunpack.c.l.b16 %v211
  %v747 = vunpack.c.l.b16 %v212
  %v748 = vunpack.c.l.b16 %v213
  %v749 = vunpack.c.l.b16 %v214
  %v750 = vunpack.c.l.b16 %v215
  %v751 = vunpack.c.l.b16 %v216
  %v752 = vunpack.c.l.b16 %v217
  %v753 = vunpack.c.l.b16 %v218
  %v754 = vunpack.c.l.b16 %v219
  %v755 = vunpack.c.l.b16 %v220
  %v756 = vunpack.c.l.b16 %v221
  %v757 = vunpack.c.l.b16 %v222
  %v758 = vunpack.c.l.b16 %v223
  %v759 = vunpack.c.l.b16 %v224
  %v760 = vunpack.c.l.b16 %v225
  %v761 = vunpack.c.l.b16 %v226
  %v762 = vunpack.c.l.b16 %v227
  %v763 = vunpack.c.l.b16 %v228
  %v764 = vunpack.c.l.b16 %v229
  %v765 = vunpack.c.l.b16 %v230
  %v766 = vunpack.c.l.b16 %v231
  %v767 = vunpack.c.l.b16 %v232
  %v768 = vunpack.c.l.b16 %v233
  %v769 = vunpack.c.l.b16 %v234
  %v770 = vunpack.c.l.b16 %v235
  %v771 = vunpack.c.l.b16 %v236
  %v772 = vunpack.c.l.b16 %v237
  %v773 = vunpack.c.l.b16 %v238
  %v774 = vunpack.c.l.b16 %v239
  %v775 = vunpack.c.l.b16 %v240
  %v776 = vunpack.c.l.b16 %v241
  %v777 = vunpack.c.l.b16 %v242
  %v778 = vunpack.c.l.b16 %v243
  %v779 = vunpack.c.l.b16 %v244
  %v780 = vunpack.c.l.b16 %v245
  %v781 = vunpack.c.l.b16 %v246
  %v782 = vunpack.c.l.b16 %v247
  %v783 = vunpack.c.l.b16 %v248
  %v784 = vunpack.c.l.b16 %v249
  %v785 = vunpack.c.l.b16 %v250
  %v786 = vunpack.c.l.b16 %v251
  %v787 = vunpack.c.l.b16 %v252
  %v788 = vunpack.c.l.b16 %v253
  %v789 = vunpack.c.l.b16 %v254
  %v790 = vunpack.c.l.b16 %v255
  %v791 = vunpack.c.l.b16 %v256
  %v792 = vunpack.c.l.b16 %v257
  %v793 = vunpack.c.l.b16 %v258
  %v794 = vunpack.c.l.b16 %v259
  %v795 = vunpack.c.l.b16 %v260
  %v796 = vunpack.c.l.b16 %v261
  %v797 = vunpack.c.l.b16 %v262
  %v798 = vunpack.c.l.b16 %v263
  %v799 = vunpack.c.l.b16 %v264
  %v800 = vunpack.c.l.b16 %v265
  %v801 = vunpack.c.l.b16 %v266
  %v802 = vunpack.c.l.b16 %v267
  %v803 = vunpack.c.l.b16 %v268
  %v804 = vunpack.c.l.b16 %v269
  %v805 = vunpack.c.l.b16 %v270
  %v806 = vpack.c.b16 %v551, %v550
  %v807 = vpack.c.b16 %v553, %v552
  %v808 = vpack.c.b16 %v555, %v554
  %v809 = vpack.c.b16 %v557, %v556
  %v810 = vpack.c.b16 %v559, %v558
  %v811 = vpack.c.b16 %v561, %v560
  %v812 = vpack.c.b16 %v563, %v562
  %v813 = vpack.c.b16 %v565, %v564
  %v814 = vpack.c.b16 %v567, %v566
  %v815 = vpack.c.b16 %v569, %v568
  %v816 = vpack.c.b16 %v571, %v570
  %v817 = vpack.c.b16 %v573, %v572
  %v818 = vpack.c.b16 %v575, %v574
  %v819 = vpack.c.b16 %v577, %v576
  %v820 = vpack.c.b16 %v579, %v578
  %v821 = vpack.c.b16 %v581, %v580
  %v822 = vpack.c.b16 %v583, %v582
  %v823 = vpack.c.b16 %v585, %v584
  %v824 = vpack.c.b16 %v587, %v586
  %v825 = vpack.c.b16 %v589, %v588
  %v826 = vpack.c.b16 %v591, %v590
  %v827 = vpack.c.b16 %v593, %v592
  %v828 = vpack.c.b16 %v595, %v594
  %v829 = vpack.c.b16 %v597, %v596
  %v830 = vpack.c.b16 %v599, %v598
  %v831 = vpack.c.b16 %v601, %v600
  %v832 = vpack.c.b16 %v603, %v602
  %v833 = vpack.c.b16 %v605, %v604
  %v834 = vpack.c.b16 %v607, %v606
  %v835 = vpack.c.b16 %v609, %v608
  %v836 = vpack.c.b16 %v611, %v610
  %v837 = vpack.c.b16 %v613, %v612
  %v838 = vpack.c.b16 %v615, %v614
  %v839 = vpack.c.b16 %v617, %v616
  %v840 = vpack.c.b16 %v619, %v618
  %v841 = vpack.c.b16 %v621, %v620
  %v842 = vpack.c.b16 %v623, %v622
  %v843 = vpack.c.b16 %v625, %v624
  %v844 = vpack.c.b16 %v627, %v626
  %v845 = vpack.c.b16 %v629, %v628
  %v846 = vpack.c.b16 %v631, %v630
  %v847 = vpack.c.b16 %v633, %v632
  %v848 = vpack.c.b16 %v635, %v634
  %v849 = vpack.c.b16 %v637, %v636
  %v850 = vpack.c.b16 %v639, %v638
  %v851 = vpack.c.b16 %v641, %v640
  %v852 = vpack.c.b16 %v643, %v642
  %v853 = vpack.c.b16 %v645, %v644
  %v854 = vpack.c.b16 %v647, %v646
  %v855 = vpack.c.b16 %v649, %v648
  %v856 = vpack.c.b16 %v651, %v650
  %v857 = vpack.c.b16 %v653, %v652
  %v858 = vpack.c.b16 %v655, %v654
  %v859 = vpack.c.b16 %v657, %v656
  %v860 = vpack.c.b16 %v659, %v658
  %v861 = vpack.c.b16 %v661, %v660
  %v862 = vpack.c.b16 %v663, %v662
  %v863 = vpack.c.b16 %v665, %v664
  %v864 = vpack.c.b16 %v667, %v666
  %v865 = vpack.c.b16 %v669, %v668
  %v866 = vpack.c.b16 %v671, %v670
  %v867 = vpack.c.b16 %v673, %v672
  %v868 = vpack.c.b16 %v675, %v674
  %v869 = vpack.c.b16 %v677, %v676
  %v870 = vpack.c.b16 %v679, %v678
  %v871 = vpack.c.b16 %v681, %v680
  %v872 = vpack.c.b16 %v683, %v682
  %v873 = vpack.c.b16 %v685, %v684
  %v874 = vpack.c.b16 %v687, %v686
  %v875 = vpack.c.b16 %v689, %v688
  %v876 = vpack.c.b16 %v691, %v690
  %v877 = vpack.c.b16 %v693, %v692
  %v878 = vpack.c.b16 %v695, %v694
  %v879 = vpack.c.b16 %v697, %v696
  %v880 = vpack.c.b16 %v699, %v698
  %v881 = vpack.c.b16 %v701, %v700
  %v882 = vpack.c.b16 %v703, %v702
  %v883 = vpack.c.b16 %v705, %v704
  %v884 = vpack.c.b16 %v707, %v706
  %v885 = vpack.c.b16 %v709, %v708
  %v886 = vpack.c.b16 %v711, %v710
  %v887 = vpack.c.b16 %v713, %v712
  %v888 = vpack.c.b16 %v715, %v714
  %v889 = vpack.c.b16 %v717, %v716
  %v890 = vpack.c.b16 %v719, %v718
  %v891 = vpack.c.b16 %v721, %v720
  %v892 = vpack.c.b16 %v723, %v722
  %v893 = vpack.c.b16 %v725, %v724
  %v894 = vpack.c.b16 %v727, %v726
  %v895 = vpack.c.b16 %v729, %v728
  %v896 = vpack.c.b16 %v731, %v730
  %v897 = vpack.c.b16 %v733, %v732
  %v898 = vpack.c.b16 %v735, %v734
  %v899 = vpack.c.b16 %v737, %v736
  %v900 = vpack.c.b16 %v739, %v738
  %v901 = vpack.c.b16 %v741, %v740
  %v902 = vpack.c.b16 %v743, %v742
  %v903 = vpack.c.b16 %v745, %v744
  %v904 = vpack.c.b16 %v747, %v746
  %v905 = vpack.c.b16 %v749, %v748
  %v906 = vpack.c.b16 %v751, %v750
  %v907 = vpack.c.b16 %v753, %v752
  %v908 = vpack.c.b16 %v755, %v754
  %v909 = vpack.c.b16 %v757, %v756
  %v910 = vpack.c.b16 %v759, %v758
  %v911 = vpack.c.b16 %v761, %v760
  %v912 = vpack.c.b16 %v763, %v762
  %v913 = vpack.c.b16 %v765, %v764
  %v914 = vpack.c.b16 %v767, %v766
  %v915 = vpack.c.b16 %v769, %v768
  %v916 = vpack.c.b16 %v771, %v770
  %v917 = vpack.c.b16 %v773, %v772
  %v918 = vpack.c.b16 %v775, %v774
  %v919 = vpack.c.b16 %v777, %v776
  %v920 = vpack.c.b16 %v779, %v778
  %v921 = vpack.c.b16 %v781, %v780
  %v922 = vpack.c.b16 %v783, %v782
  %v923 = vpack.c.b16 %v785, %v784
  %v924 = vpack.c.b16 %v787, %v786
  %v925 = vpack.c.b16 %v789, %v788
  %v926 = vpack.c.b16 %v791, %v790
  %v927 = vpack.c.b16 %v793, %v792
  %v928 = vpack.c.b16 %v795, %v794
  %v929 = vpack.c.b16 %v797, %v796
  %v930 = vpack.c.b16 %v799, %v798
  %v931 = vpack.c.b16 %v801, %v800
  %v932 = vpack.c.b16 %v803, %v802
  %v933 = vpack.c.b16 %v805, %v804
  %v1078 = vunpack.c.l.b16 %v271
  %v1079 = vunpack.c.l.b16 %v272
  %v1080 = vunpack.c.l.b16 %v273
  %v1081 = vunpack.c.l.b16 %v274
  %v1082 = vunpack.c.l.b16 %v275
  %v1083 = vunpack.c.l.b16 %v276
  %v1084 = vunpack.c.l.b16 %v277
  %v1085 = vunpack.c.l.b16 %v278
  %v1086 = vunpack.c.l.b16 %v279
  %v1087 = vunpack.c.l.b16 %v280
  %v1088 = vunpack.c.l.b16 %v281
  %v1089 = vunpack.c.l.b16 %v282
  %v1090 = vunpack.c.l.b16 %v283
  %v1091 = vunpack.c.l.b16 %v284
  %v1092 = vunpack.c.l.b16 %v285
  %v1093 = vunpack.c.l.b16 %v286
  %v1094 = vpack.c.b16 %v1079, %v1078
  %v1095 = vpack.c.b16 %v1081, %v1080
  %v1096 = vpack.c.b16 %v1083, %v1082
  %v1097 = vpack.c.b16 %v1085, %v1084
  %v1098 = vpack.c.b16 %v1087, %v1086
  %v1099 = vpack.c.b16 %v1089, %v1088
  %v1100 = vpack.c.b16 %v1091, %v1090
  %v1101 = vpack.c.b16 %v1093, %v1092
  %1110 = vmatprep.subr.bf16.mxu0 0
  %1111 = vmatpush1.bf16.msra.mxu0 %v1101
  %1112 = vmatprep.subr.bf16.mxu0 0
  %1113 = vmatpush1.bf16.msra.mxu0 %v1100
  %1114 = vmatprep.subr.bf16.mxu0 0
  %1115 = vmatpush1.bf16.msra.mxu0 %v1099
  %1116 = vmatprep.subr.bf16.mxu0 0
  %1117 = vmatpush1.bf16.msra.mxu0 %v1098
  %1118 = vmatprep.subr.bf16.mxu0 0
  %1119 = vmatpush1.bf16.msra.mxu0 %v1097
  %1120 = vmatprep.subr.bf16.mxu0 0
  %1121 = vmatpush1.bf16.msra.mxu0 %v1096
  %1122 = vmatprep.subr.bf16.mxu0 0
  %1123 = vmatpush1.bf16.msra.mxu0 %v1095
  %1124 = vmatprep.subr.bf16.mxu0 0
  %1125 = vmatpush1.bf16.msra.mxu0 %v1094
  %1126 = vmatprep.subr.bf16.mxu0 0
  %1127 = vmatpush2.bf16.msra.mxu0 0
  %1128 = vmatprep.subr.bf16.mxu0 0
  %1129 = vmatpush2.bf16.msra.mxu0 0
  %1130 = vmatprep.subr.bf16.mxu0 0
  %1131 = vmatpush2.bf16.msra.mxu0 0
  %1132 = vmatprep.subr.bf16.mxu0 0
  %1133 = vmatpush2.bf16.msra.mxu0 0
  %1134 = vmatprep.subr.bf16.mxu0 0
  %1135 = vmatpush2.bf16.msra.mxu0 0
  %1136 = vmatprep.subr.bf16.mxu0 0
  %1137 = vmatpush2.bf16.msra.mxu0 0
  %1138 = vmatprep.subr.bf16.mxu0 0
  %1139 = vmatpush2.bf16.msra.mxu0 0
  %1140 = vmatprep.subr.bf16.mxu0 0
  %1141 = vmatpush2.bf16.msra.mxu0 0
  %1142 = vmatprep.mubr.bf16.mxu0 0
  %1143 = vmatmul.mubr.bf16.gmra.mxu0 %v806
  %v1144 = vpop.f32.mrf.mxu0
  %v1145 = vadd.f32 %v292, %v1144
  %v1146 = vpop.f32.mrf.mxu0
  %v1147 = vpop.f32.mrf.mxu0
  %v1148 = vadd.f32 %v292, %v1147
  %v1149 = vpop.f32.mrf.mxu0
  %1150 = vmatprep.mubr.bf16.mxu0 0
  %1151 = vmatmul.mubr.bf16.gmra.mxu0 %v807
  %v1152 = vpop.f32.mrf.mxu0
  %v1153 = vadd.f32 %v292, %v1152
  %v1154 = vpop.f32.mrf.mxu0
  %v1155 = vpop.f32.mrf.mxu0
  %v1156 = vadd.f32 %v292, %v1155
  %v1157 = vpop.f32.mrf.mxu0
  %1158 = vmatprep.mubr.bf16.mxu0 0
  %1159 = vmatmul.mubr.bf16.gmra.mxu0 %v808
  %v1160 = vpop.f32.mrf.mxu0
  %v1161 = vadd.f32 %v292, %v1160
  %v1162 = vpop.f32.mrf.mxu0
  %v1163 = vpop.f32.mrf.mxu0
  %v1164 = vadd.f32 %v292, %v1163
  %v1165 = vpop.f32.mrf.mxu0
  %1166 = vmatprep.mubr.bf16.mxu0 0
  %1167 = vmatmul.mubr.bf16.gmra.mxu0 %v809
  %v1168 = vpop.f32.mrf.mxu0
  %v1169 = vadd.f32 %v292, %v1168
  %v1170 = vpop.f32.mrf.mxu0
  %v1171 = vpop.f32.mrf.mxu0
  %v1172 = vadd.f32 %v292, %v1171
  %v1173 = vpop.f32.mrf.mxu0
  %1174 = vmatprep.mubr.bf16.mxu0 0
  %1175 = vmatmul.mubr.bf16.gmra.mxu0 %v810
  %v1176 = vpop.f32.mrf.mxu0
  %v1177 = vadd.f32 %v292, %v1176
  %v1178 = vpop.f32.mrf.mxu0
  %v1179 = vpop.f32.mrf.mxu0
  %v1180 = vadd.f32 %v292, %v1179
  %v1181 = vpop.f32.mrf.mxu0
  %1182 = vmatprep.mubr.bf16.mxu0 0
  %1183 = vmatmul.mubr.bf16.gmra.mxu0 %v811
  %v1184 = vpop.f32.mrf.mxu0
  %v1185 = vadd.f32 %v292, %v1184
  %v1186 = vpop.f32.mrf.mxu0
  %v1187 = vpop.f32.mrf.mxu0
  %v1188 = vadd.f32 %v292, %v1187
  %v1189 = vpop.f32.mrf.mxu0
  %1190 = vmatprep.mubr.bf16.mxu0 0
  %1191 = vmatmul.mubr.bf16.gmra.mxu0 %v812
  %v1192 = vpop.f32.mrf.mxu0
  %v1193 = vadd.f32 %v292, %v1192
  %v1194 = vpop.f32.mrf.mxu0
  %v1195 = vpop.f32.mrf.mxu0
  %v1196 = vadd.f32 %v292, %v1195
  %v1197 = vpop.f32.mrf.mxu0
  %1198 = vmatprep.mubr.bf16.mxu0 0
  %1199 = vmatmul.mubr.bf16.gmra.mxu0 %v813
  %v1200 = vpop.f32.mrf.mxu0
  %v1201 = vadd.f32 %v292, %v1200
  %v1202 = vpop.f32.mrf.mxu0
  %v1203 = vpop.f32.mrf.mxu0
  %v1204 = vadd.f32 %v292, %v1203
  %v1205 = vpop.f32.mrf.mxu0
  %1206 = vmatprep.mubr.bf16.mxu0 0
  %1207 = vmatmul.mubr.bf16.gmra.mxu0 %v814
  %v1208 = vpop.f32.mrf.mxu0
  %v1209 = vadd.f32 %v292, %v1208
  %v1210 = vpop.f32.mrf.mxu0
  %v1211 = vpop.f32.mrf.mxu0
  %v1212 = vadd.f32 %v292, %v1211
  %v1213 = vpop.f32.mrf.mxu0
  %1214 = vmatprep.mubr.bf16.mxu0 0
  %1215 = vmatmul.mubr.bf16.gmra.mxu0 %v815
  %v1216 = vpop.f32.mrf.mxu0
  %v1217 = vadd.f32 %v292, %v1216
  %v1218 = vpop.f32.mrf.mxu0
  %v1219 = vpop.f32.mrf.mxu0
  %v1220 = vadd.f32 %v292, %v1219
  %v1221 = vpop.f32.mrf.mxu0
  %1222 = vmatprep.mubr.bf16.mxu0 0
  %1223 = vmatmul.mubr.bf16.gmra.mxu0 %v816
  %v1224 = vpop.f32.mrf.mxu0
  %v1225 = vadd.f32 %v292, %v1224
  %v1226 = vpop.f32.mrf.mxu0
  %v1227 = vpop.f32.mrf.mxu0
  %v1228 = vadd.f32 %v292, %v1227
  %v1229 = vpop.f32.mrf.mxu0
  %1230 = vmatprep.mubr.bf16.mxu0 0
  %1231 = vmatmul.mubr.bf16.gmra.mxu0 %v817
  %v1232 = vpop.f32.mrf.mxu0
  %v1233 = vadd.f32 %v292, %v1232
  %v1234 = vpop.f32.mrf.mxu0
  %v1235 = vpop.f32.mrf.mxu0
  %v1236 = vadd.f32 %v292, %v1235
  %v1237 = vpop.f32.mrf.mxu0
  %1238 = vmatprep.mubr.bf16.mxu0 0
  %1239 = vmatmul.mubr.bf16.gmra.mxu0 %v818
  %v1240 = vpop.f32.mrf.mxu0
  %v1241 = vadd.f32 %v292, %v1240
  %v1242 = vpop.f32.mrf.mxu0
  %v1243 = vpop.f32.mrf.mxu0
  %v1244 = vadd.f32 %v292, %v1243
  %v1245 = vpop.f32.mrf.mxu0
  %1246 = vmatprep.mubr.bf16.mxu0 0
  %1247 = vmatmul.mubr.bf16.gmra.mxu0 %v819
  %v1248 = vpop.f32.mrf.mxu0
  %v1249 = vadd.f32 %v292, %v1248
  %v1250 = vpop.f32.mrf.mxu0
  %v1251 = vpop.f32.mrf.mxu0
  %v1252 = vadd.f32 %v292, %v1251
  %v1253 = vpop.f32.mrf.mxu0
  %1254 = vmatprep.mubr.bf16.mxu0 0
  %1255 = vmatmul.mubr.bf16.gmra.mxu0 %v820
  %v1256 = vpop.f32.mrf.mxu0
  %v1257 = vadd.f32 %v292, %v1256
  %v1258 = vpop.f32.mrf.mxu0
  %v1259 = vpop.f32.mrf.mxu0
  %v1260 = vadd.f32 %v292, %v1259
  %v1261 = vpop.f32.mrf.mxu0
  %1262 = vmatprep.mubr.bf16.mxu0 0
  %1263 = vmatmul.mubr.bf16.gmra.mxu0 %v821
  %v1264 = vpop.f32.mrf.mxu0
  %v1265 = vadd.f32 %v292, %v1264
  %v1266 = vpop.f32.mrf.mxu0
  %v1267 = vpop.f32.mrf.mxu0
  %v1268 = vadd.f32 %v292, %v1267
  %v1269 = vpop.f32.mrf.mxu0
  %1270 = vmatprep.mubr.bf16.mxu0 0
  %1271 = vmatmul.mubr.bf16.gmra.mxu0 %v822
  %v1272 = vpop.f32.mrf.mxu0
  %v1273 = vadd.f32 %v292, %v1272
  %v1274 = vpop.f32.mrf.mxu0
  %v1275 = vpop.f32.mrf.mxu0
  %v1276 = vadd.f32 %v292, %v1275
  %v1277 = vpop.f32.mrf.mxu0
  %1278 = vmatprep.mubr.bf16.mxu0 0
  %1279 = vmatmul.mubr.bf16.gmra.mxu0 %v823
  %v1280 = vpop.f32.mrf.mxu0
  %v1281 = vadd.f32 %v292, %v1280
  %v1282 = vpop.f32.mrf.mxu0
  %v1283 = vpop.f32.mrf.mxu0
  %v1284 = vadd.f32 %v292, %v1283
  %v1285 = vpop.f32.mrf.mxu0
  %1286 = vmatprep.mubr.bf16.mxu0 0
  %1287 = vmatmul.mubr.bf16.gmra.mxu0 %v824
  %v1288 = vpop.f32.mrf.mxu0
  %v1289 = vadd.f32 %v292, %v1288
  %v1290 = vpop.f32.mrf.mxu0
  %v1291 = vpop.f32.mrf.mxu0
  %v1292 = vadd.f32 %v292, %v1291
  %v1293 = vpop.f32.mrf.mxu0
  %1294 = vmatprep.mubr.bf16.mxu0 0
  %1295 = vmatmul.mubr.bf16.gmra.mxu0 %v825
  %v1296 = vpop.f32.mrf.mxu0
  %v1297 = vadd.f32 %v292, %v1296
  %v1298 = vpop.f32.mrf.mxu0
  %v1299 = vpop.f32.mrf.mxu0
  %v1300 = vadd.f32 %v292, %v1299
  %v1301 = vpop.f32.mrf.mxu0
  %1302 = vmatprep.mubr.bf16.mxu0 0
  %1303 = vmatmul.mubr.bf16.gmra.mxu0 %v826
  %v1304 = vpop.f32.mrf.mxu0
  %v1305 = vadd.f32 %v292, %v1304
  %v1306 = vpop.f32.mrf.mxu0
  %v1307 = vpop.f32.mrf.mxu0
  %v1308 = vadd.f32 %v292, %v1307
  %v1309 = vpop.f32.mrf.mxu0
  %1310 = vmatprep.mubr.bf16.mxu0 0
  %1311 = vmatmul.mubr.bf16.gmra.mxu0 %v827
  %v1312 = vpop.f32.mrf.mxu0
  %v1313 = vadd.f32 %v292, %v1312
  %v1314 = vpop.f32.mrf.mxu0
  %v1315 = vpop.f32.mrf.mxu0
  %v1316 = vadd.f32 %v292, %v1315
  %v1317 = vpop.f32.mrf.mxu0
  %1318 = vmatprep.mubr.bf16.mxu0 0
  %1319 = vmatmul.mubr.bf16.gmra.mxu0 %v828
  %v1320 = vpop.f32.mrf.mxu0
  %v1321 = vadd.f32 %v292, %v1320
  %v1322 = vpop.f32.mrf.mxu0
  %v1323 = vpop.f32.mrf.mxu0
  %v1324 = vadd.f32 %v292, %v1323
  %v1325 = vpop.f32.mrf.mxu0
  %1326 = vmatprep.mubr.bf16.mxu0 0
  %1327 = vmatmul.mubr.bf16.gmra.mxu0 %v829
  %v1328 = vpop.f32.mrf.mxu0
  %v1329 = vadd.f32 %v292, %v1328
  %v1330 = vpop.f32.mrf.mxu0
  %v1331 = vpop.f32.mrf.mxu0
  %v1332 = vadd.f32 %v292, %v1331
  %v1333 = vpop.f32.mrf.mxu0
  %1334 = vmatprep.mubr.bf16.mxu0 0
  %1335 = vmatmul.mubr.bf16.gmra.mxu0 %v830
  %v1336 = vpop.f32.mrf.mxu0
  %v1337 = vadd.f32 %v292, %v1336
  %v1338 = vpop.f32.mrf.mxu0
  %v1339 = vpop.f32.mrf.mxu0
  %v1340 = vadd.f32 %v292, %v1339
  %v1341 = vpop.f32.mrf.mxu0
  %1342 = vmatprep.mubr.bf16.mxu0 0
  %1343 = vmatmul.mubr.bf16.gmra.mxu0 %v831
  %v1344 = vpop.f32.mrf.mxu0
  %v1345 = vadd.f32 %v292, %v1344
  %v1346 = vpop.f32.mrf.mxu0
  %v1347 = vpop.f32.mrf.mxu0
  %v1348 = vadd.f32 %v292, %v1347
  %v1349 = vpop.f32.mrf.mxu0
  %1350 = vmatprep.mubr.bf16.mxu0 0
  %1351 = vmatmul.mubr.bf16.gmra.mxu0 %v832
  %v1352 = vpop.f32.mrf.mxu0
  %v1353 = vadd.f32 %v292, %v1352
  %v1354 = vpop.f32.mrf.mxu0
  %v1355 = vpop.f32.mrf.mxu0
  %v1356 = vadd.f32 %v292, %v1355
  %v1357 = vpop.f32.mrf.mxu0
  %1358 = vmatprep.mubr.bf16.mxu0 0
  %1359 = vmatmul.mubr.bf16.gmra.mxu0 %v833
  %v1360 = vpop.f32.mrf.mxu0
  %v1361 = vadd.f32 %v292, %v1360
  %v1362 = vpop.f32.mrf.mxu0
  %v1363 = vpop.f32.mrf.mxu0
  %v1364 = vadd.f32 %v292, %v1363
  %v1365 = vpop.f32.mrf.mxu0
  %1366 = vmatprep.mubr.bf16.mxu0 0
  %1367 = vmatmul.mubr.bf16.gmra.mxu0 %v834
  %v1368 = vpop.f32.mrf.mxu0
  %v1369 = vadd.f32 %v292, %v1368
  %v1370 = vpop.f32.mrf.mxu0
  %v1371 = vpop.f32.mrf.mxu0
  %v1372 = vadd.f32 %v292, %v1371
  %v1373 = vpop.f32.mrf.mxu0
  %1374 = vmatprep.mubr.bf16.mxu0 0
  %1375 = vmatmul.mubr.bf16.gmra.mxu0 %v835
  %v1376 = vpop.f32.mrf.mxu0
  %v1377 = vadd.f32 %v292, %v1376
  %v1378 = vpop.f32.mrf.mxu0
  %v1379 = vpop.f32.mrf.mxu0
  %v1380 = vadd.f32 %v292, %v1379
  %v1381 = vpop.f32.mrf.mxu0
  %1382 = vmatprep.mubr.bf16.mxu0 0
  %1383 = vmatmul.mubr.bf16.gmra.mxu0 %v836
  %v1384 = vpop.f32.mrf.mxu0
  %v1385 = vadd.f32 %v292, %v1384
  %v1386 = vpop.f32.mrf.mxu0
  %v1387 = vpop.f32.mrf.mxu0
  %v1388 = vadd.f32 %v292, %v1387
  %v1389 = vpop.f32.mrf.mxu0
  %1390 = vmatprep.mubr.bf16.mxu0 0
  %1391 = vmatmul.mubr.bf16.gmra.mxu0 %v837
  %v1392 = vpop.f32.mrf.mxu0
  %v1393 = vadd.f32 %v292, %v1392
  %v1394 = vpop.f32.mrf.mxu0
  %v1395 = vpop.f32.mrf.mxu0
  %v1396 = vadd.f32 %v292, %v1395
  %v1397 = vpop.f32.mrf.mxu0
  %1398 = vmatprep.mubr.bf16.mxu0 0
  %1399 = vmatmul.mubr.bf16.gmra.mxu0 %v838
  %v1400 = vpop.f32.mrf.mxu0
  %v1401 = vadd.f32 %v292, %v1400
  %v1402 = vpop.f32.mrf.mxu0
  %v1403 = vpop.f32.mrf.mxu0
  %v1404 = vadd.f32 %v292, %v1403
  %v1405 = vpop.f32.mrf.mxu0
  %1406 = vmatprep.mubr.bf16.mxu0 0
  %1407 = vmatmul.mubr.bf16.gmra.mxu0 %v839
  %v1408 = vpop.f32.mrf.mxu0
  %v1409 = vadd.f32 %v292, %v1408
  %v1410 = vpop.f32.mrf.mxu0
  %v1411 = vpop.f32.mrf.mxu0
  %v1412 = vadd.f32 %v292, %v1411
  %v1413 = vpop.f32.mrf.mxu0
  %1414 = vmatprep.mubr.bf16.mxu0 0
  %1415 = vmatmul.mubr.bf16.gmra.mxu0 %v840
  %v1416 = vpop.f32.mrf.mxu0
  %v1417 = vadd.f32 %v292, %v1416
  %v1418 = vpop.f32.mrf.mxu0
  %v1419 = vpop.f32.mrf.mxu0
  %v1420 = vadd.f32 %v292, %v1419
  %v1421 = vpop.f32.mrf.mxu0
  %1422 = vmatprep.mubr.bf16.mxu0 0
  %1423 = vmatmul.mubr.bf16.gmra.mxu0 %v841
  %v1424 = vpop.f32.mrf.mxu0
  %v1425 = vadd.f32 %v292, %v1424
  %v1426 = vpop.f32.mrf.mxu0
  %v1427 = vpop.f32.mrf.mxu0
  %v1428 = vadd.f32 %v292, %v1427
  %v1429 = vpop.f32.mrf.mxu0
  %1430 = vmatprep.mubr.bf16.mxu0 0
  %1431 = vmatmul.mubr.bf16.gmra.mxu0 %v842
  %v1432 = vpop.f32.mrf.mxu0
  %v1433 = vadd.f32 %v292, %v1432
  %v1434 = vpop.f32.mrf.mxu0
  %v1435 = vpop.f32.mrf.mxu0
  %v1436 = vadd.f32 %v292, %v1435
  %v1437 = vpop.f32.mrf.mxu0
  %1438 = vmatprep.mubr.bf16.mxu0 0
  %1439 = vmatmul.mubr.bf16.gmra.mxu0 %v843
  %v1440 = vpop.f32.mrf.mxu0
  %v1441 = vadd.f32 %v292, %v1440
  %v1442 = vpop.f32.mrf.mxu0
  %v1443 = vpop.f32.mrf.mxu0
  %v1444 = vadd.f32 %v292, %v1443
  %v1445 = vpop.f32.mrf.mxu0
  %1446 = vmatprep.mubr.bf16.mxu0 0
  %1447 = vmatmul.mubr.bf16.gmra.mxu0 %v844
  %v1448 = vpop.f32.mrf.mxu0
  %v1449 = vadd.f32 %v292, %v1448
  %v1450 = vpop.f32.mrf.mxu0
  %v1451 = vpop.f32.mrf.mxu0
  %v1452 = vadd.f32 %v292, %v1451
  %v1453 = vpop.f32.mrf.mxu0
  %1454 = vmatprep.mubr.bf16.mxu0 0
  %1455 = vmatmul.mubr.bf16.gmra.mxu0 %v845
  %v1456 = vpop.f32.mrf.mxu0
  %v1457 = vadd.f32 %v292, %v1456
  %v1458 = vpop.f32.mrf.mxu0
  %v1459 = vpop.f32.mrf.mxu0
  %v1460 = vadd.f32 %v292, %v1459
  %v1461 = vpop.f32.mrf.mxu0
  %1462 = vmatprep.mubr.bf16.mxu0 0
  %1463 = vmatmul.mubr.bf16.gmra.mxu0 %v846
  %v1464 = vpop.f32.mrf.mxu0
  %v1465 = vadd.f32 %v292, %v1464
  %v1466 = vpop.f32.mrf.mxu0
  %v1467 = vpop.f32.mrf.mxu0
  %v1468 = vadd.f32 %v292, %v1467
  %v1469 = vpop.f32.mrf.mxu0
  %1470 = vmatprep.mubr.bf16.mxu0 0
  %1471 = vmatmul.mubr.bf16.gmra.mxu0 %v847
  %v1472 = vpop.f32.mrf.mxu0
  %v1473 = vadd.f32 %v292, %v1472
  %v1474 = vpop.f32.mrf.mxu0
  %v1475 = vpop.f32.mrf.mxu0
  %v1476 = vadd.f32 %v292, %v1475
  %v1477 = vpop.f32.mrf.mxu0
  %1478 = vmatprep.mubr.bf16.mxu0 0
  %1479 = vmatmul.mubr.bf16.gmra.mxu0 %v848
  %v1480 = vpop.f32.mrf.mxu0
  %v1481 = vadd.f32 %v292, %v1480
  %v1482 = vpop.f32.mrf.mxu0
  %v1483 = vpop.f32.mrf.mxu0
  %v1484 = vadd.f32 %v292, %v1483
  %v1485 = vpop.f32.mrf.mxu0
  %1486 = vmatprep.mubr.bf16.mxu0 0
  %1487 = vmatmul.mubr.bf16.gmra.mxu0 %v849
  %v1488 = vpop.f32.mrf.mxu0
  %v1489 = vadd.f32 %v292, %v1488
  %v1490 = vpop.f32.mrf.mxu0
  %v1491 = vpop.f32.mrf.mxu0
  %v1492 = vadd.f32 %v292, %v1491
  %v1493 = vpop.f32.mrf.mxu0
  %1494 = vmatprep.mubr.bf16.mxu0 0
  %1495 = vmatmul.mubr.bf16.gmra.mxu0 %v850
  %v1496 = vpop.f32.mrf.mxu0
  %v1497 = vadd.f32 %v292, %v1496
  %v1498 = vpop.f32.mrf.mxu0
  %v1499 = vpop.f32.mrf.mxu0
  %v1500 = vadd.f32 %v292, %v1499
  %v1501 = vpop.f32.mrf.mxu0
  %1502 = vmatprep.mubr.bf16.mxu0 0
  %1503 = vmatmul.mubr.bf16.gmra.mxu0 %v851
  %v1504 = vpop.f32.mrf.mxu0
  %v1505 = vadd.f32 %v292, %v1504
  %v1506 = vpop.f32.mrf.mxu0
  %v1507 = vpop.f32.mrf.mxu0
  %v1508 = vadd.f32 %v292, %v1507
  %v1509 = vpop.f32.mrf.mxu0
  %1510 = vmatprep.mubr.bf16.mxu0 0
  %1511 = vmatmul.mubr.bf16.gmra.mxu0 %v852
  %v1512 = vpop.f32.mrf.mxu0
  %v1513 = vadd.f32 %v292, %v1512
  %v1514 = vpop.f32.mrf.mxu0
  %v1515 = vpop.f32.mrf.mxu0
  %v1516 = vadd.f32 %v292, %v1515
  %v1517 = vpop.f32.mrf.mxu0
  %1518 = vmatprep.mubr.bf16.mxu0 0
  %1519 = vmatmul.mubr.bf16.gmra.mxu0 %v853
  %v1520 = vpop.f32.mrf.mxu0
  %v1521 = vadd.f32 %v292, %v1520
  %v1522 = vpop.f32.mrf.mxu0
  %v1523 = vpop.f32.mrf.mxu0
  %v1524 = vadd.f32 %v292, %v1523
  %v1525 = vpop.f32.mrf.mxu0
  %1526 = vmatprep.mubr.bf16.mxu0 0
  %1527 = vmatmul.mubr.bf16.gmra.mxu0 %v854
  %v1528 = vpop.f32.mrf.mxu0
  %v1529 = vadd.f32 %v292, %v1528
  %v1530 = vpop.f32.mrf.mxu0
  %v1531 = vpop.f32.mrf.mxu0
  %v1532 = vadd.f32 %v292, %v1531
  %v1533 = vpop.f32.mrf.mxu0
  %1534 = vmatprep.mubr.bf16.mxu0 0
  %1535 = vmatmul.mubr.bf16.gmra.mxu0 %v855
  %v1536 = vpop.f32.mrf.mxu0
  %v1537 = vadd.f32 %v292, %v1536
  %v1538 = vpop.f32.mrf.mxu0
  %v1539 = vpop.f32.mrf.mxu0
  %v1540 = vadd.f32 %v292, %v1539
  %v1541 = vpop.f32.mrf.mxu0
  %1542 = vmatprep.mubr.bf16.mxu0 0
  %1543 = vmatmul.mubr.bf16.gmra.mxu0 %v856
  %v1544 = vpop.f32.mrf.mxu0
  %v1545 = vadd.f32 %v292, %v1544
  %v1546 = vpop.f32.mrf.mxu0
  %v1547 = vpop.f32.mrf.mxu0
  %v1548 = vadd.f32 %v292, %v1547
  %v1549 = vpop.f32.mrf.mxu0
  %1550 = vmatprep.mubr.bf16.mxu0 0
  %1551 = vmatmul.mubr.bf16.gmra.mxu0 %v857
  %v1552 = vpop.f32.mrf.mxu0
  %v1553 = vadd.f32 %v292, %v1552
  %v1554 = vpop.f32.mrf.mxu0
  %v1555 = vpop.f32.mrf.mxu0
  %v1556 = vadd.f32 %v292, %v1555
  %v1557 = vpop.f32.mrf.mxu0
  %1558 = vmatprep.mubr.bf16.mxu0 0
  %1559 = vmatmul.mubr.bf16.gmra.mxu0 %v858
  %v1560 = vpop.f32.mrf.mxu0
  %v1561 = vadd.f32 %v292, %v1560
  %v1562 = vpop.f32.mrf.mxu0
  %v1563 = vpop.f32.mrf.mxu0
  %v1564 = vadd.f32 %v292, %v1563
  %v1565 = vpop.f32.mrf.mxu0
  %1566 = vmatprep.mubr.bf16.mxu0 0
  %1567 = vmatmul.mubr.bf16.gmra.mxu0 %v859
  %v1568 = vpop.f32.mrf.mxu0
  %v1569 = vadd.f32 %v292, %v1568
  %v1570 = vpop.f32.mrf.mxu0
  %v1571 = vpop.f32.mrf.mxu0
  %v1572 = vadd.f32 %v292, %v1571
  %v1573 = vpop.f32.mrf.mxu0
  %1574 = vmatprep.mubr.bf16.mxu0 0
  %1575 = vmatmul.mubr.bf16.gmra.mxu0 %v860
  %v1576 = vpop.f32.mrf.mxu0
  %v1577 = vadd.f32 %v292, %v1576
  %v1578 = vpop.f32.mrf.mxu0
  %v1579 = vpop.f32.mrf.mxu0
  %v1580 = vadd.f32 %v292, %v1579
  %v1581 = vpop.f32.mrf.mxu0
  %1582 = vmatprep.mubr.bf16.mxu0 0
  %1583 = vmatmul.mubr.bf16.gmra.mxu0 %v861
  %v1584 = vpop.f32.mrf.mxu0
  %v1585 = vadd.f32 %v292, %v1584
  %v1586 = vpop.f32.mrf.mxu0
  %v1587 = vpop.f32.mrf.mxu0
  %v1588 = vadd.f32 %v292, %v1587
  %v1589 = vpop.f32.mrf.mxu0
  %1590 = vmatprep.mubr.bf16.mxu0 0
  %1591 = vmatmul.mubr.bf16.gmra.mxu0 %v862
  %v1592 = vpop.f32.mrf.mxu0
  %v1593 = vadd.f32 %v292, %v1592
  %v1594 = vpop.f32.mrf.mxu0
  %v1595 = vpop.f32.mrf.mxu0
  %v1596 = vadd.f32 %v292, %v1595
  %v1597 = vpop.f32.mrf.mxu0
  %1598 = vmatprep.mubr.bf16.mxu0 0
  %1599 = vmatmul.mubr.bf16.gmra.mxu0 %v863
  %v1600 = vpop.f32.mrf.mxu0
  %v1601 = vadd.f32 %v292, %v1600
  %v1602 = vpop.f32.mrf.mxu0
  %v1603 = vpop.f32.mrf.mxu0
  %v1604 = vadd.f32 %v292, %v1603
  %v1605 = vpop.f32.mrf.mxu0
  %1606 = vmatprep.mubr.bf16.mxu0 0
  %1607 = vmatmul.mubr.bf16.gmra.mxu0 %v864
  %v1608 = vpop.f32.mrf.mxu0
  %v1609 = vadd.f32 %v292, %v1608
  %v1610 = vpop.f32.mrf.mxu0
  %v1611 = vpop.f32.mrf.mxu0
  %v1612 = vadd.f32 %v292, %v1611
  %v1613 = vpop.f32.mrf.mxu0
  %1614 = vmatprep.mubr.bf16.mxu0 0
  %1615 = vmatmul.mubr.bf16.gmra.mxu0 %v865
  %v1616 = vpop.f32.mrf.mxu0
  %v1617 = vadd.f32 %v292, %v1616
  %v1618 = vpop.f32.mrf.mxu0
  %v1619 = vpop.f32.mrf.mxu0
  %v1620 = vadd.f32 %v292, %v1619
  %v1621 = vpop.f32.mrf.mxu0
  %1622 = vmatprep.mubr.bf16.mxu0 0
  %1623 = vmatmul.mubr.bf16.gmra.mxu0 %v866
  %v1624 = vpop.f32.mrf.mxu0
  %v1625 = vadd.f32 %v292, %v1624
  %v1626 = vpop.f32.mrf.mxu0
  %v1627 = vpop.f32.mrf.mxu0
  %v1628 = vadd.f32 %v292, %v1627
  %v1629 = vpop.f32.mrf.mxu0
  %1630 = vmatprep.mubr.bf16.mxu0 0
  %1631 = vmatmul.mubr.bf16.gmra.mxu0 %v867
  %v1632 = vpop.f32.mrf.mxu0
  %v1633 = vadd.f32 %v292, %v1632
  %v1634 = vpop.f32.mrf.mxu0
  %v1635 = vpop.f32.mrf.mxu0
  %v1636 = vadd.f32 %v292, %v1635
  %v1637 = vpop.f32.mrf.mxu0
  %1638 = vmatprep.mubr.bf16.mxu0 0
  %1639 = vmatmul.mubr.bf16.gmra.mxu0 %v868
  %v1640 = vpop.f32.mrf.mxu0
  %v1641 = vadd.f32 %v292, %v1640
  %v1642 = vpop.f32.mrf.mxu0
  %v1643 = vpop.f32.mrf.mxu0
  %v1644 = vadd.f32 %v292, %v1643
  %v1645 = vpop.f32.mrf.mxu0
  %1646 = vmatprep.mubr.bf16.mxu0 0
  %1647 = vmatmul.mubr.bf16.gmra.mxu0 %v869
  %v1648 = vpop.f32.mrf.mxu0
  %v1649 = vadd.f32 %v292, %v1648
  %v1650 = vpop.f32.mrf.mxu0
  %v1651 = vpop.f32.mrf.mxu0
  %v1652 = vadd.f32 %v292, %v1651
  %v1653 = vpop.f32.mrf.mxu0
  %1654 = vmatprep.mubr.bf16.mxu0 0
  %1655 = vmatmul.mubr.bf16.gmra.mxu0 %v870
  %v1656 = vpop.f32.mrf.mxu0
  %v1657 = vadd.f32 %v292, %v1656
  %v1658 = vpop.f32.mrf.mxu0
  %v1659 = vpop.f32.mrf.mxu0
  %v1660 = vadd.f32 %v292, %v1659
  %v1661 = vpop.f32.mrf.mxu0
  %1662 = vmatprep.mubr.bf16.mxu0 0
  %1663 = vmatmul.mubr.bf16.gmra.mxu0 %v871
  %v1664 = vpop.f32.mrf.mxu0
  %v1665 = vadd.f32 %v292, %v1664
  %v1666 = vpop.f32.mrf.mxu0
  %v1667 = vpop.f32.mrf.mxu0
  %v1668 = vadd.f32 %v292, %v1667
  %v1669 = vpop.f32.mrf.mxu0
  %1670 = vmatprep.mubr.bf16.mxu0 0
  %1671 = vmatmul.mubr.bf16.gmra.mxu0 %v872
  %v1672 = vpop.f32.mrf.mxu0
  %v1673 = vadd.f32 %v292, %v1672
  %v1674 = vpop.f32.mrf.mxu0
  %v1675 = vpop.f32.mrf.mxu0
  %v1676 = vadd.f32 %v292, %v1675
  %v1677 = vpop.f32.mrf.mxu0
  %1678 = vmatprep.mubr.bf16.mxu0 0
  %1679 = vmatmul.mubr.bf16.gmra.mxu0 %v873
  %v1680 = vpop.f32.mrf.mxu0
  %v1681 = vadd.f32 %v292, %v1680
  %v1682 = vpop.f32.mrf.mxu0
  %v1683 = vpop.f32.mrf.mxu0
  %v1684 = vadd.f32 %v292, %v1683
  %v1685 = vpop.f32.mrf.mxu0
  %1686 = vmatprep.mubr.bf16.mxu0 0
  %1687 = vmatmul.mubr.bf16.gmra.mxu0 %v874
  %v1688 = vpop.f32.mrf.mxu0
  %v1689 = vadd.f32 %v292, %v1688
  %v1690 = vpop.f32.mrf.mxu0
  %v1691 = vpop.f32.mrf.mxu0
  %v1692 = vadd.f32 %v292, %v1691
  %v1693 = vpop.f32.mrf.mxu0
  %1694 = vmatprep.mubr.bf16.mxu0 0
  %1695 = vmatmul.mubr.bf16.gmra.mxu0 %v875
  %v1696 = vpop.f32.mrf.mxu0
  %v1697 = vadd.f32 %v292, %v1696
  %v1698 = vpop.f32.mrf.mxu0
  %v1699 = vpop.f32.mrf.mxu0
  %v1700 = vadd.f32 %v292, %v1699
  %v1701 = vpop.f32.mrf.mxu0
  %1702 = vmatprep.mubr.bf16.mxu0 0
  %1703 = vmatmul.mubr.bf16.gmra.mxu0 %v876
  %v1704 = vpop.f32.mrf.mxu0
  %v1705 = vadd.f32 %v292, %v1704
  %v1706 = vpop.f32.mrf.mxu0
  %v1707 = vpop.f32.mrf.mxu0
  %v1708 = vadd.f32 %v292, %v1707
  %v1709 = vpop.f32.mrf.mxu0
  %1710 = vmatprep.mubr.bf16.mxu0 0
  %1711 = vmatmul.mubr.bf16.gmra.mxu0 %v877
  %v1712 = vpop.f32.mrf.mxu0
  %v1713 = vadd.f32 %v292, %v1712
  %v1714 = vpop.f32.mrf.mxu0
  %v1715 = vpop.f32.mrf.mxu0
  %v1716 = vadd.f32 %v292, %v1715
  %v1717 = vpop.f32.mrf.mxu0
  %1718 = vmatprep.mubr.bf16.mxu0 0
  %1719 = vmatmul.mubr.bf16.gmra.mxu0 %v878
  %v1720 = vpop.f32.mrf.mxu0
  %v1721 = vadd.f32 %v292, %v1720
  %v1722 = vpop.f32.mrf.mxu0
  %v1723 = vpop.f32.mrf.mxu0
  %v1724 = vadd.f32 %v292, %v1723
  %v1725 = vpop.f32.mrf.mxu0
  %1726 = vmatprep.mubr.bf16.mxu0 0
  %1727 = vmatmul.mubr.bf16.gmra.mxu0 %v879
  %v1728 = vpop.f32.mrf.mxu0
  %v1729 = vadd.f32 %v292, %v1728
  %v1730 = vpop.f32.mrf.mxu0
  %v1731 = vpop.f32.mrf.mxu0
  %v1732 = vadd.f32 %v292, %v1731
  %v1733 = vpop.f32.mrf.mxu0
  %1734 = vmatprep.mubr.bf16.mxu0 0
  %1735 = vmatmul.mubr.bf16.gmra.mxu0 %v880
  %v1736 = vpop.f32.mrf.mxu0
  %v1737 = vadd.f32 %v292, %v1736
  %v1738 = vpop.f32.mrf.mxu0
  %v1739 = vpop.f32.mrf.mxu0
  %v1740 = vadd.f32 %v292, %v1739
  %v1741 = vpop.f32.mrf.mxu0
  %1742 = vmatprep.mubr.bf16.mxu0 0
  %1743 = vmatmul.mubr.bf16.gmra.mxu0 %v881
  %v1744 = vpop.f32.mrf.mxu0
  %v1745 = vadd.f32 %v292, %v1744
  %v1746 = vpop.f32.mrf.mxu0
  %v1747 = vpop.f32.mrf.mxu0
  %v1748 = vadd.f32 %v292, %v1747
  %v1749 = vpop.f32.mrf.mxu0
  %1750 = vmatprep.mubr.bf16.mxu0 0
  %1751 = vmatmul.mubr.bf16.gmra.mxu0 %v882
  %v1752 = vpop.f32.mrf.mxu0
  %v1753 = vadd.f32 %v292, %v1752
  %v1754 = vpop.f32.mrf.mxu0
  %v1755 = vpop.f32.mrf.mxu0
  %v1756 = vadd.f32 %v292, %v1755
  %v1757 = vpop.f32.mrf.mxu0
  %1758 = vmatprep.mubr.bf16.mxu0 0
  %1759 = vmatmul.mubr.bf16.gmra.mxu0 %v883
  %v1760 = vpop.f32.mrf.mxu0
  %v1761 = vadd.f32 %v292, %v1760
  %v1762 = vpop.f32.mrf.mxu0
  %v1763 = vpop.f32.mrf.mxu0
  %v1764 = vadd.f32 %v292, %v1763
  %v1765 = vpop.f32.mrf.mxu0
  %1766 = vmatprep.mubr.bf16.mxu0 0
  %1767 = vmatmul.mubr.bf16.gmra.mxu0 %v884
  %v1768 = vpop.f32.mrf.mxu0
  %v1769 = vadd.f32 %v292, %v1768
  %v1770 = vpop.f32.mrf.mxu0
  %v1771 = vpop.f32.mrf.mxu0
  %v1772 = vadd.f32 %v292, %v1771
  %v1773 = vpop.f32.mrf.mxu0
  %1774 = vmatprep.mubr.bf16.mxu0 0
  %1775 = vmatmul.mubr.bf16.gmra.mxu0 %v885
  %v1776 = vpop.f32.mrf.mxu0
  %v1777 = vadd.f32 %v292, %v1776
  %v1778 = vpop.f32.mrf.mxu0
  %v1779 = vpop.f32.mrf.mxu0
  %v1780 = vadd.f32 %v292, %v1779
  %v1781 = vpop.f32.mrf.mxu0
  %1782 = vmatprep.mubr.bf16.mxu0 0
  %1783 = vmatmul.mubr.bf16.gmra.mxu0 %v886
  %v1784 = vpop.f32.mrf.mxu0
  %v1785 = vadd.f32 %v292, %v1784
  %v1786 = vpop.f32.mrf.mxu0
  %v1787 = vpop.f32.mrf.mxu0
  %v1788 = vadd.f32 %v292, %v1787
  %v1789 = vpop.f32.mrf.mxu0
  %1790 = vmatprep.mubr.bf16.mxu0 0
  %1791 = vmatmul.mubr.bf16.gmra.mxu0 %v887
  %v1792 = vpop.f32.mrf.mxu0
  %v1793 = vadd.f32 %v292, %v1792
  %v1794 = vpop.f32.mrf.mxu0
  %v1795 = vpop.f32.mrf.mxu0
  %v1796 = vadd.f32 %v292, %v1795
  %v1797 = vpop.f32.mrf.mxu0
  %1798 = vmatprep.mubr.bf16.mxu0 0
  %1799 = vmatmul.mubr.bf16.gmra.mxu0 %v888
  %v1800 = vpop.f32.mrf.mxu0
  %v1801 = vadd.f32 %v292, %v1800
  %v1802 = vpop.f32.mrf.mxu0
  %v1803 = vpop.f32.mrf.mxu0
  %v1804 = vadd.f32 %v292, %v1803
  %v1805 = vpop.f32.mrf.mxu0
  %1806 = vmatprep.mubr.bf16.mxu0 0
  %1807 = vmatmul.mubr.bf16.gmra.mxu0 %v889
  %v1808 = vpop.f32.mrf.mxu0
  %v1809 = vadd.f32 %v292, %v1808
  %v1810 = vpop.f32.mrf.mxu0
  %v1811 = vpop.f32.mrf.mxu0
  %v1812 = vadd.f32 %v292, %v1811
  %v1813 = vpop.f32.mrf.mxu0
  %1814 = vmatprep.mubr.bf16.mxu0 0
  %1815 = vmatmul.mubr.bf16.gmra.mxu0 %v890
  %v1816 = vpop.f32.mrf.mxu0
  %v1817 = vadd.f32 %v292, %v1816
  %v1818 = vpop.f32.mrf.mxu0
  %v1819 = vpop.f32.mrf.mxu0
  %v1820 = vadd.f32 %v292, %v1819
  %v1821 = vpop.f32.mrf.mxu0
  %1822 = vmatprep.mubr.bf16.mxu0 0
  %1823 = vmatmul.mubr.bf16.gmra.mxu0 %v891
  %v1824 = vpop.f32.mrf.mxu0
  %v1825 = vadd.f32 %v292, %v1824
  %v1826 = vpop.f32.mrf.mxu0
  %v1827 = vpop.f32.mrf.mxu0
  %v1828 = vadd.f32 %v292, %v1827
  %v1829 = vpop.f32.mrf.mxu0
  %1830 = vmatprep.mubr.bf16.mxu0 0
  %1831 = vmatmul.mubr.bf16.gmra.mxu0 %v892
  %v1832 = vpop.f32.mrf.mxu0
  %v1833 = vadd.f32 %v292, %v1832
  %v1834 = vpop.f32.mrf.mxu0
  %v1835 = vpop.f32.mrf.mxu0
  %v1836 = vadd.f32 %v292, %v1835
  %v1837 = vpop.f32.mrf.mxu0
  %1838 = vmatprep.mubr.bf16.mxu0 0
  %1839 = vmatmul.mubr.bf16.gmra.mxu0 %v893
  %v1840 = vpop.f32.mrf.mxu0
  %v1841 = vadd.f32 %v292, %v1840
  %v1842 = vpop.f32.mrf.mxu0
  %v1843 = vpop.f32.mrf.mxu0
  %v1844 = vadd.f32 %v292, %v1843
  %v1845 = vpop.f32.mrf.mxu0
  %1846 = vmatprep.mubr.bf16.mxu0 0
  %1847 = vmatmul.mubr.bf16.gmra.mxu0 %v894
  %v1848 = vpop.f32.mrf.mxu0
  %v1849 = vadd.f32 %v292, %v1848
  %v1850 = vpop.f32.mrf.mxu0
  %v1851 = vpop.f32.mrf.mxu0
  %v1852 = vadd.f32 %v292, %v1851
  %v1853 = vpop.f32.mrf.mxu0
  %1854 = vmatprep.mubr.bf16.mxu0 0
  %1855 = vmatmul.mubr.bf16.gmra.mxu0 %v895
  %v1856 = vpop.f32.mrf.mxu0
  %v1857 = vadd.f32 %v292, %v1856
  %v1858 = vpop.f32.mrf.mxu0
  %v1859 = vpop.f32.mrf.mxu0
  %v1860 = vadd.f32 %v292, %v1859
  %v1861 = vpop.f32.mrf.mxu0
  %1862 = vmatprep.mubr.bf16.mxu0 0
  %1863 = vmatmul.mubr.bf16.gmra.mxu0 %v896
  %v1864 = vpop.f32.mrf.mxu0
  %v1865 = vadd.f32 %v292, %v1864
  %v1866 = vpop.f32.mrf.mxu0
  %v1867 = vpop.f32.mrf.mxu0
  %v1868 = vadd.f32 %v292, %v1867
  %v1869 = vpop.f32.mrf.mxu0
  %1870 = vmatprep.mubr.bf16.mxu0 0
  %1871 = vmatmul.mubr.bf16.gmra.mxu0 %v897
  %v1872 = vpop.f32.mrf.mxu0
  %v1873 = vadd.f32 %v292, %v1872
  %v1874 = vpop.f32.mrf.mxu0
  %v1875 = vpop.f32.mrf.mxu0
  %v1876 = vadd.f32 %v292, %v1875
  %v1877 = vpop.f32.mrf.mxu0
  %1878 = vmatprep.mubr.bf16.mxu0 0
  %1879 = vmatmul.mubr.bf16.gmra.mxu0 %v898
  %v1880 = vpop.f32.mrf.mxu0
  %v1881 = vadd.f32 %v292, %v1880
  %v1882 = vpop.f32.mrf.mxu0
  %v1883 = vpop.f32.mrf.mxu0
  %v1884 = vadd.f32 %v292, %v1883
  %v1885 = vpop.f32.mrf.mxu0
  %1886 = vmatprep.mubr.bf16.mxu0 0
  %1887 = vmatmul.mubr.bf16.gmra.mxu0 %v899
  %v1888 = vpop.f32.mrf.mxu0
  %v1889 = vadd.f32 %v292, %v1888
  %v1890 = vpop.f32.mrf.mxu0
  %v1891 = vpop.f32.mrf.mxu0
  %v1892 = vadd.f32 %v292, %v1891
  %v1893 = vpop.f32.mrf.mxu0
  %1894 = vmatprep.mubr.bf16.mxu0 0
  %1895 = vmatmul.mubr.bf16.gmra.mxu0 %v900
  %v1896 = vpop.f32.mrf.mxu0
  %v1897 = vadd.f32 %v292, %v1896
  %v1898 = vpop.f32.mrf.mxu0
  %v1899 = vpop.f32.mrf.mxu0
  %v1900 = vadd.f32 %v292, %v1899
  %v1901 = vpop.f32.mrf.mxu0
  %1902 = vmatprep.mubr.bf16.mxu0 0
  %1903 = vmatmul.mubr.bf16.gmra.mxu0 %v901
  %v1904 = vpop.f32.mrf.mxu0
  %v1905 = vadd.f32 %v292, %v1904
  %v1906 = vpop.f32.mrf.mxu0
  %v1907 = vpop.f32.mrf.mxu0
  %v1908 = vadd.f32 %v292, %v1907
  %v1909 = vpop.f32.mrf.mxu0
  %1910 = vmatprep.mubr.bf16.mxu0 0
  %1911 = vmatmul.mubr.bf16.gmra.mxu0 %v902
  %v1912 = vpop.f32.mrf.mxu0
  %v1913 = vadd.f32 %v292, %v1912
  %v1914 = vpop.f32.mrf.mxu0
  %v1915 = vpop.f32.mrf.mxu0
  %v1916 = vadd.f32 %v292, %v1915
  %v1917 = vpop.f32.mrf.mxu0
  %1918 = vmatprep.mubr.bf16.mxu0 0
  %1919 = vmatmul.mubr.bf16.gmra.mxu0 %v903
  %v1920 = vpop.f32.mrf.mxu0
  %v1921 = vadd.f32 %v292, %v1920
  %v1922 = vpop.f32.mrf.mxu0
  %v1923 = vpop.f32.mrf.mxu0
  %v1924 = vadd.f32 %v292, %v1923
  %v1925 = vpop.f32.mrf.mxu0
  %1926 = vmatprep.mubr.bf16.mxu0 0
  %1927 = vmatmul.mubr.bf16.gmra.mxu0 %v904
  %v1928 = vpop.f32.mrf.mxu0
  %v1929 = vadd.f32 %v292, %v1928
  %v1930 = vpop.f32.mrf.mxu0
  %v1931 = vpop.f32.mrf.mxu0
  %v1932 = vadd.f32 %v292, %v1931
  %v1933 = vpop.f32.mrf.mxu0
  %1934 = vmatprep.mubr.bf16.mxu0 0
  %1935 = vmatmul.mubr.bf16.gmra.mxu0 %v905
  %v1936 = vpop.f32.mrf.mxu0
  %v1937 = vadd.f32 %v292, %v1936
  %v1938 = vpop.f32.mrf.mxu0
  %v1939 = vpop.f32.mrf.mxu0
  %v1940 = vadd.f32 %v292, %v1939
  %v1941 = vpop.f32.mrf.mxu0
  %1942 = vmatprep.mubr.bf16.mxu0 0
  %1943 = vmatmul.mubr.bf16.gmra.mxu0 %v906
  %v1944 = vpop.f32.mrf.mxu0
  %v1945 = vadd.f32 %v292, %v1944
  %v1946 = vpop.f32.mrf.mxu0
  %v1947 = vpop.f32.mrf.mxu0
  %v1948 = vadd.f32 %v292, %v1947
  %v1949 = vpop.f32.mrf.mxu0
  %1950 = vmatprep.mubr.bf16.mxu0 0
  %1951 = vmatmul.mubr.bf16.gmra.mxu0 %v907
  %v1952 = vpop.f32.mrf.mxu0
  %v1953 = vadd.f32 %v292, %v1952
  %v1954 = vpop.f32.mrf.mxu0
  %v1955 = vpop.f32.mrf.mxu0
  %v1956 = vadd.f32 %v292, %v1955
  %v1957 = vpop.f32.mrf.mxu0
  %1958 = vmatprep.mubr.bf16.mxu0 0
  %1959 = vmatmul.mubr.bf16.gmra.mxu0 %v908
  %v1960 = vpop.f32.mrf.mxu0
  %v1961 = vadd.f32 %v292, %v1960
  %v1962 = vpop.f32.mrf.mxu0
  %v1963 = vpop.f32.mrf.mxu0
  %v1964 = vadd.f32 %v292, %v1963
  %v1965 = vpop.f32.mrf.mxu0
  %1966 = vmatprep.mubr.bf16.mxu0 0
  %1967 = vmatmul.mubr.bf16.gmra.mxu0 %v909
  %v1968 = vpop.f32.mrf.mxu0
  %v1969 = vadd.f32 %v292, %v1968
  %v1970 = vpop.f32.mrf.mxu0
  %v1971 = vpop.f32.mrf.mxu0
  %v1972 = vadd.f32 %v292, %v1971
  %v1973 = vpop.f32.mrf.mxu0
  %1974 = vmatprep.mubr.bf16.mxu0 0
  %1975 = vmatmul.mubr.bf16.gmra.mxu0 %v910
  %v1976 = vpop.f32.mrf.mxu0
  %v1977 = vadd.f32 %v292, %v1976
  %v1978 = vpop.f32.mrf.mxu0
  %v1979 = vpop.f32.mrf.mxu0
  %v1980 = vadd.f32 %v292, %v1979
  %v1981 = vpop.f32.mrf.mxu0
  %1982 = vmatprep.mubr.bf16.mxu0 0
  %1983 = vmatmul.mubr.bf16.gmra.mxu0 %v911
  %v1984 = vpop.f32.mrf.mxu0
  %v1985 = vadd.f32 %v292, %v1984
  %v1986 = vpop.f32.mrf.mxu0
  %v1987 = vpop.f32.mrf.mxu0
  %v1988 = vadd.f32 %v292, %v1987
  %v1989 = vpop.f32.mrf.mxu0
  %1990 = vmatprep.mubr.bf16.mxu0 0
  %1991 = vmatmul.mubr.bf16.gmra.mxu0 %v912
  %v1992 = vpop.f32.mrf.mxu0
  %v1993 = vadd.f32 %v292, %v1992
  %v1994 = vpop.f32.mrf.mxu0
  %v1995 = vpop.f32.mrf.mxu0
  %v1996 = vadd.f32 %v292, %v1995
  %v1997 = vpop.f32.mrf.mxu0
  %1998 = vmatprep.mubr.bf16.mxu0 0
  %1999 = vmatmul.mubr.bf16.gmra.mxu0 %v913
  %v2000 = vpop.f32.mrf.mxu0
  %v2001 = vadd.f32 %v292, %v2000
  %v2002 = vpop.f32.mrf.mxu0
  %v2003 = vpop.f32.mrf.mxu0
  %v2004 = vadd.f32 %v292, %v2003
  %v2005 = vpop.f32.mrf.mxu0
  %2006 = vmatprep.mubr.bf16.mxu0 0
  %2007 = vmatmul.mubr.bf16.gmra.mxu0 %v914
  %v2008 = vpop.f32.mrf.mxu0
  %v2009 = vadd.f32 %v292, %v2008
  %v2010 = vpop.f32.mrf.mxu0
  %v2011 = vpop.f32.mrf.mxu0
  %v2012 = vadd.f32 %v292, %v2011
  %v2013 = vpop.f32.mrf.mxu0
  %2014 = vmatprep.mubr.bf16.mxu0 0
  %2015 = vmatmul.mubr.bf16.gmra.mxu0 %v915
  %v2016 = vpop.f32.mrf.mxu0
  %v2017 = vadd.f32 %v292, %v2016
  %v2018 = vpop.f32.mrf.mxu0
  %v2019 = vpop.f32.mrf.mxu0
  %v2020 = vadd.f32 %v292, %v2019
  %v2021 = vpop.f32.mrf.mxu0
  %2022 = vmatprep.mubr.bf16.mxu0 0
  %2023 = vmatmul.mubr.bf16.gmra.mxu0 %v916
  %v2024 = vpop.f32.mrf.mxu0
  %v2025 = vadd.f32 %v292, %v2024
  %v2026 = vpop.f32.mrf.mxu0
  %v2027 = vpop.f32.mrf.mxu0
  %v2028 = vadd.f32 %v292, %v2027
  %v2029 = vpop.f32.mrf.mxu0
  %2030 = vmatprep.mubr.bf16.mxu0 0
  %2031 = vmatmul.mubr.bf16.gmra.mxu0 %v917
  %v2032 = vpop.f32.mrf.mxu0
  %v2033 = vadd.f32 %v292, %v2032
  %v2034 = vpop.f32.mrf.mxu0
  %v2035 = vpop.f32.mrf.mxu0
  %v2036 = vadd.f32 %v292, %v2035
  %v2037 = vpop.f32.mrf.mxu0
  %2038 = vmatprep.mubr.bf16.mxu0 0
  %2039 = vmatmul.mubr.bf16.gmra.mxu0 %v918
  %v2040 = vpop.f32.mrf.mxu0
  %v2041 = vadd.f32 %v292, %v2040
  %v2042 = vpop.f32.mrf.mxu0
  %v2043 = vpop.f32.mrf.mxu0
  %v2044 = vadd.f32 %v292, %v2043
  %v2045 = vpop.f32.mrf.mxu0
  %2046 = vmatprep.mubr.bf16.mxu0 0
  %2047 = vmatmul.mubr.bf16.gmra.mxu0 %v919
  %v2048 = vpop.f32.mrf.mxu0
  %v2049 = vadd.f32 %v292, %v2048
  %v2050 = vpop.f32.mrf.mxu0
  %v2051 = vpop.f32.mrf.mxu0
  %v2052 = vadd.f32 %v292, %v2051
  %v2053 = vpop.f32.mrf.mxu0
  %2054 = vmatprep.mubr.bf16.mxu0 0
  %2055 = vmatmul.mubr.bf16.gmra.mxu0 %v920
  %v2056 = vpop.f32.mrf.mxu0
  %v2057 = vadd.f32 %v292, %v2056
  %v2058 = vpop.f32.mrf.mxu0
  %v2059 = vpop.f32.mrf.mxu0
  %v2060 = vadd.f32 %v292, %v2059
  %v2061 = vpop.f32.mrf.mxu0
  %2062 = vmatprep.mubr.bf16.mxu0 0
  %2063 = vmatmul.mubr.bf16.gmra.mxu0 %v921
  %v2064 = vpop.f32.mrf.mxu0
  %v2065 = vadd.f32 %v292, %v2064
  %v2066 = vpop.f32.mrf.mxu0
  %v2067 = vpop.f32.mrf.mxu0
  %v2068 = vadd.f32 %v292, %v2067
  %v2069 = vpop.f32.mrf.mxu0
  %2070 = vmatprep.mubr.bf16.mxu0 0
  %2071 = vmatmul.mubr.bf16.gmra.mxu0 %v922
  %v2072 = vpop.f32.mrf.mxu0
  %v2073 = vadd.f32 %v292, %v2072
  %v2074 = vpop.f32.mrf.mxu0
  %v2075 = vpop.f32.mrf.mxu0
  %v2076 = vadd.f32 %v292, %v2075
  %v2077 = vpop.f32.mrf.mxu0
  %2078 = vmatprep.mubr.bf16.mxu0 0
  %2079 = vmatmul.mubr.bf16.gmra.mxu0 %v923
  %v2080 = vpop.f32.mrf.mxu0
  %v2081 = vadd.f32 %v292, %v2080
  %v2082 = vpop.f32.mrf.mxu0
  %v2083 = vpop.f32.mrf.mxu0
  %v2084 = vadd.f32 %v292, %v2083
  %v2085 = vpop.f32.mrf.mxu0
  %2086 = vmatprep.mubr.bf16.mxu0 0
  %2087 = vmatmul.mubr.bf16.gmra.mxu0 %v924
  %v2088 = vpop.f32.mrf.mxu0
  %v2089 = vadd.f32 %v292, %v2088
  %v2090 = vpop.f32.mrf.mxu0
  %v2091 = vpop.f32.mrf.mxu0
  %v2092 = vadd.f32 %v292, %v2091
  %v2093 = vpop.f32.mrf.mxu0
  %2094 = vmatprep.mubr.bf16.mxu0 0
  %2095 = vmatmul.mubr.bf16.gmra.mxu0 %v925
  %v2096 = vpop.f32.mrf.mxu0
  %v2097 = vadd.f32 %v292, %v2096
  %v2098 = vpop.f32.mrf.mxu0
  %v2099 = vpop.f32.mrf.mxu0
  %v2100 = vadd.f32 %v292, %v2099
  %v2101 = vpop.f32.mrf.mxu0
  %2102 = vmatprep.mubr.bf16.mxu0 0
  %2103 = vmatmul.mubr.bf16.gmra.mxu0 %v926
  %v2104 = vpop.f32.mrf.mxu0
  %v2105 = vadd.f32 %v292, %v2104
  %v2106 = vpop.f32.mrf.mxu0
  %v2107 = vpop.f32.mrf.mxu0
  %v2108 = vadd.f32 %v292, %v2107
  %v2109 = vpop.f32.mrf.mxu0
  %2110 = vmatprep.mubr.bf16.mxu0 0
  %2111 = vmatmul.mubr.bf16.gmra.mxu0 %v927
  %v2112 = vpop.f32.mrf.mxu0
  %v2113 = vadd.f32 %v292, %v2112
  %v2114 = vpop.f32.mrf.mxu0
  %v2115 = vpop.f32.mrf.mxu0
  %v2116 = vadd.f32 %v292, %v2115
  %v2117 = vpop.f32.mrf.mxu0
  %2118 = vmatprep.mubr.bf16.mxu0 0
  %2119 = vmatmul.mubr.bf16.gmra.mxu0 %v928
  %v2120 = vpop.f32.mrf.mxu0
  %v2121 = vadd.f32 %v292, %v2120
  %v2122 = vpop.f32.mrf.mxu0
  %v2123 = vpop.f32.mrf.mxu0
  %v2124 = vadd.f32 %v292, %v2123
  %v2125 = vpop.f32.mrf.mxu0
  %2126 = vmatprep.mubr.bf16.mxu0 0
  %2127 = vmatmul.mubr.bf16.gmra.mxu0 %v929
  %v2128 = vpop.f32.mrf.mxu0
  %v2129 = vadd.f32 %v292, %v2128
  %v2130 = vpop.f32.mrf.mxu0
  %v2131 = vpop.f32.mrf.mxu0
  %v2132 = vadd.f32 %v292, %v2131
  %v2133 = vpop.f32.mrf.mxu0
  %2134 = vmatprep.mubr.bf16.mxu0 0
  %2135 = vmatmul.mubr.bf16.gmra.mxu0 %v930
  %v2136 = vpop.f32.mrf.mxu0
  %v2137 = vadd.f32 %v292, %v2136
  %v2138 = vpop.f32.mrf.mxu0
  %v2139 = vpop.f32.mrf.mxu0
  %v2140 = vadd.f32 %v292, %v2139
  %v2141 = vpop.f32.mrf.mxu0
  %2142 = vmatprep.mubr.bf16.mxu0 0
  %2143 = vmatmul.mubr.bf16.gmra.mxu0 %v931
  %v2144 = vpop.f32.mrf.mxu0
  %v2145 = vadd.f32 %v292, %v2144
  %v2146 = vpop.f32.mrf.mxu0
  %v2147 = vpop.f32.mrf.mxu0
  %v2148 = vadd.f32 %v292, %v2147
  %v2149 = vpop.f32.mrf.mxu0
  %2150 = vmatprep.mubr.bf16.mxu0 0
  %2151 = vmatmul.mubr.bf16.gmra.mxu0 %v932
  %v2152 = vpop.f32.mrf.mxu0
  %v2153 = vadd.f32 %v292, %v2152
  %v2154 = vpop.f32.mrf.mxu0
  %v2155 = vpop.f32.mrf.mxu0
  %v2156 = vadd.f32 %v292, %v2155
  %v2157 = vpop.f32.mrf.mxu0
  %2158 = vmatprep.mubr.bf16.mxu0 0
  %2159 = vmatmul.mubr.bf16.gmra.mxu0 %v933
  %v2160 = vpop.f32.mrf.mxu0
  %v2161 = vadd.f32 %v292, %v2160
  %v2162 = vpop.f32.mrf.mxu0
  %v2163 = vpop.f32.mrf.mxu0
  %v2164 = vadd.f32 %v292, %v2163
  %v2165 = vpop.f32.mrf.mxu0
  %2166 = vdwg.mxu0
  %v2167 = vmax.f32 %v1145, 0.0
  %v2168 = vmax.f32 %v1148, 0.0
  %v2169 = vmax.f32 %v1153, 0.0
  %v2170 = vmax.f32 %v1156, 0.0
  %v2171 = vmax.f32 %v1161, 0.0
  %v2172 = vmax.f32 %v1164, 0.0
  %v2173 = vmax.f32 %v1169, 0.0
  %v2174 = vmax.f32 %v1172, 0.0
  %v2175 = vmax.f32 %v1177, 0.0
  %v2176 = vmax.f32 %v1180, 0.0
  %v2177 = vmax.f32 %v1185, 0.0
  %v2178 = vmax.f32 %v1188, 0.0
  %v2179 = vmax.f32 %v1193, 0.0
  %v2180 = vmax.f32 %v1196, 0.0
  %v2181 = vmax.f32 %v1201, 0.0
  %v2182 = vmax.f32 %v1204, 0.0
  %v2183 = vmax.f32 %v1209, 0.0
  %v2184 = vmax.f32 %v1212, 0.0
  %v2185 = vmax.f32 %v1217, 0.0
  %v2186 = vmax.f32 %v1220, 0.0
  %v2187 = vmax.f32 %v1225, 0.0
  %v2188 = vmax.f32 %v1228, 0.0
  %v2189 = vmax.f32 %v1233, 0.0
  %v2190 = vmax.f32 %v1236, 0.0
  %v2191 = vmax.f32 %v1241, 0.0
  %v2192 = vmax.f32 %v1244, 0.0
  %v2193 = vmax.f32 %v1249, 0.0
  %v2194 = vmax.f32 %v1252, 0.0
  %v2195 = vmax.f32 %v1257, 0.0
  %v2196 = vmax.f32 %v1260, 0.0
  %v2197 = vmax.f32 %v1265, 0.0
  %v2198 = vmax.f32 %v1268, 0.0
  %v2199 = vmax.f32 %v1273, 0.0
  %v2200 = vmax.f32 %v1276, 0.0
  %v2201 = vmax.f32 %v1281, 0.0
  %v2202 = vmax.f32 %v1284, 0.0
  %v2203 = vmax.f32 %v1289, 0.0
  %v2204 = vmax.f32 %v1292, 0.0
  %v2205 = vmax.f32 %v1297, 0.0
  %v2206 = vmax.f32 %v1300, 0.0
  %v2207 = vmax.f32 %v1305, 0.0
  %v2208 = vmax.f32 %v1308, 0.0
  %v2209 = vmax.f32 %v1313, 0.0
  %v2210 = vmax.f32 %v1316, 0.0
  %v2211 = vmax.f32 %v1321, 0.0
  %v2212 = vmax.f32 %v1324, 0.0
  %v2213 = vmax.f32 %v1329, 0.0
  %v2214 = vmax.f32 %v1332, 0.0
  %v2215 = vmax.f32 %v1337, 0.0
  %v2216 = vmax.f32 %v1340, 0.0
  %v2217 = vmax.f32 %v1345, 0.0
  %v2218 = vmax.f32 %v1348, 0.0
  %v2219 = vmax.f32 %v1353, 0.0
  %v2220 = vmax.f32 %v1356, 0.0
  %v2221 = vmax.f32 %v1361, 0.0
  %v2222 = vmax.f32 %v1364, 0.0
  %v2223 = vmax.f32 %v1369, 0.0
  %v2224 = vmax.f32 %v1372, 0.0
  %v2225 = vmax.f32 %v1377, 0.0
  %v2226 = vmax.f32 %v1380, 0.0
  %v2227 = vmax.f32 %v1385, 0.0
  %v2228 = vmax.f32 %v1388, 0.0
  %v2229 = vmax.f32 %v1393, 0.0
  %v2230 = vmax.f32 %v1396, 0.0
  %v2231 = vmax.f32 %v1401, 0.0
  %v2232 = vmax.f32 %v1404, 0.0
  %v2233 = vmax.f32 %v1409, 0.0
  %v2234 = vmax.f32 %v1412, 0.0
  %v2235 = vmax.f32 %v1417, 0.0
  %v2236 = vmax.f32 %v1420, 0.0
  %v2237 = vmax.f32 %v1425, 0.0
  %v2238 = vmax.f32 %v1428, 0.0
  %v2239 = vmax.f32 %v1433, 0.0
  %v2240 = vmax.f32 %v1436, 0.0
  %v2241 = vmax.f32 %v1441, 0.0
  %v2242 = vmax.f32 %v1444, 0.0
  %v2243 = vmax.f32 %v1449, 0.0
  %v2244 = vmax.f32 %v1452, 0.0
  %v2245 = vmax.f32 %v1457, 0.0
  %v2246 = vmax.f32 %v1460, 0.0
  %v2247 = vmax.f32 %v1465, 0.0
  %v2248 = vmax.f32 %v1468, 0.0
  %v2249 = vmax.f32 %v1473, 0.0
  %v2250 = vmax.f32 %v1476, 0.0
  %v2251 = vmax.f32 %v1481, 0.0
  %v2252 = vmax.f32 %v1484, 0.0
  %v2253 = vmax.f32 %v1489, 0.0
  %v2254 = vmax.f32 %v1492, 0.0
  %v2255 = vmax.f32 %v1497, 0.0
  %v2256 = vmax.f32 %v1500, 0.0
  %v2257 = vmax.f32 %v1505, 0.0
  %v2258 = vmax.f32 %v1508, 0.0
  %v2259 = vmax.f32 %v1513, 0.0
  %v2260 = vmax.f32 %v1516, 0.0
  %v2261 = vmax.f32 %v1521, 0.0
  %v2262 = vmax.f32 %v1524, 0.0
  %v2263 = vmax.f32 %v1529, 0.0
  %v2264 = vmax.f32 %v1532, 0.0
  %v2265 = vmax.f32 %v1537, 0.0
  %v2266 = vmax.f32 %v1540, 0.0
  %v2267 = vmax.f32 %v1545, 0.0
  %v2268 = vmax.f32 %v1548, 0.0
  %v2269 = vmax.f32 %v1553, 0.0
  %v2270 = vmax.f32 %v1556, 0.0
  %v2271 = vmax.f32 %v1561, 0.0
  %v2272 = vmax.f32 %v1564, 0.0
  %v2273 = vmax.f32 %v1569, 0.0
  %v2274 = vmax.f32 %v1572, 0.0
  %v2275 = vmax.f32 %v1577, 0.0
  %v2276 = vmax.f32 %v1580, 0.0
  %v2277 = vmax.f32 %v1585, 0.0
  %v2278 = vmax.f32 %v1588, 0.0
  %v2279 = vmax.f32 %v1593, 0.0
  %v2280 = vmax.f32 %v1596, 0.0
  %v2281 = vmax.f32 %v1601, 0.0
  %v2282 = vmax.f32 %v1604, 0.0
  %v2283 = vmax.f32 %v1609, 0.0
  %v2284 = vmax.f32 %v1612, 0.0
  %v2285 = vmax.f32 %v1617, 0.0
  %v2286 = vmax.f32 %v1620, 0.0
  %v2287 = vmax.f32 %v1625, 0.0
  %v2288 = vmax.f32 %v1628, 0.0
  %v2289 = vmax.f32 %v1633, 0.0
  %v2290 = vmax.f32 %v1636, 0.0
  %v2291 = vmax.f32 %v1641, 0.0
  %v2292 = vmax.f32 %v1644, 0.0
  %v2293 = vmax.f32 %v1649, 0.0
  %v2294 = vmax.f32 %v1652, 0.0
  %v2295 = vmax.f32 %v1657, 0.0
  %v2296 = vmax.f32 %v1660, 0.0
  %v2297 = vmax.f32 %v1665, 0.0
  %v2298 = vmax.f32 %v1668, 0.0
  %v2299 = vmax.f32 %v1673, 0.0
  %v2300 = vmax.f32 %v1676, 0.0
  %v2301 = vmax.f32 %v1681, 0.0
  %v2302 = vmax.f32 %v1684, 0.0
  %v2303 = vmax.f32 %v1689, 0.0
  %v2304 = vmax.f32 %v1692, 0.0
  %v2305 = vmax.f32 %v1697, 0.0
  %v2306 = vmax.f32 %v1700, 0.0
  %v2307 = vmax.f32 %v1705, 0.0
  %v2308 = vmax.f32 %v1708, 0.0
  %v2309 = vmax.f32 %v1713, 0.0
  %v2310 = vmax.f32 %v1716, 0.0
  %v2311 = vmax.f32 %v1721, 0.0
  %v2312 = vmax.f32 %v1724, 0.0
  %v2313 = vmax.f32 %v1729, 0.0
  %v2314 = vmax.f32 %v1732, 0.0
  %v2315 = vmax.f32 %v1737, 0.0
  %v2316 = vmax.f32 %v1740, 0.0
  %v2317 = vmax.f32 %v1745, 0.0
  %v2318 = vmax.f32 %v1748, 0.0
  %v2319 = vmax.f32 %v1753, 0.0
  %v2320 = vmax.f32 %v1756, 0.0
  %v2321 = vmax.f32 %v1761, 0.0
  %v2322 = vmax.f32 %v1764, 0.0
  %v2323 = vmax.f32 %v1769, 0.0
  %v2324 = vmax.f32 %v1772, 0.0
  %v2325 = vmax.f32 %v1777, 0.0
  %v2326 = vmax.f32 %v1780, 0.0
  %v2327 = vmax.f32 %v1785, 0.0
  %v2328 = vmax.f32 %v1788, 0.0
  %v2329 = vmax.f32 %v1793, 0.0
  %v2330 = vmax.f32 %v1796, 0.0
  %v2331 = vmax.f32 %v1801, 0.0
  %v2332 = vmax.f32 %v1804, 0.0
  %v2333 = vmax.f32 %v1809, 0.0
  %v2334 = vmax.f32 %v1812, 0.0
  %v2335 = vmax.f32 %v1817, 0.0
  %v2336 = vmax.f32 %v1820, 0.0
  %v2337 = vmax.f32 %v1825, 0.0
  %v2338 = vmax.f32 %v1828, 0.0
  %v2339 = vmax.f32 %v1833, 0.0
  %v2340 = vmax.f32 %v1836, 0.0
  %v2341 = vmax.f32 %v1841, 0.0
  %v2342 = vmax.f32 %v1844, 0.0
  %v2343 = vmax.f32 %v1849, 0.0
  %v2344 = vmax.f32 %v1852, 0.0
  %v2345 = vmax.f32 %v1857, 0.0
  %v2346 = vmax.f32 %v1860, 0.0
  %v2347 = vmax.f32 %v1865, 0.0
  %v2348 = vmax.f32 %v1868, 0.0
  %v2349 = vmax.f32 %v1873, 0.0
  %v2350 = vmax.f32 %v1876, 0.0
  %v2351 = vmax.f32 %v1881, 0.0
  %v2352 = vmax.f32 %v1884, 0.0
  %v2353 = vmax.f32 %v1889, 0.0
  %v2354 = vmax.f32 %v1892, 0.0
  %v2355 = vmax.f32 %v1897, 0.0
  %v2356 = vmax.f32 %v1900, 0.0
  %v2357 = vmax.f32 %v1905, 0.0
  %v2358 = vmax.f32 %v1908, 0.0
  %v2359 = vmax.f32 %v1913, 0.0
  %v2360 = vmax.f32 %v1916, 0.0
  %v2361 = vmax.f32 %v1921, 0.0
  %v2362 = vmax.f32 %v1924, 0.0
  %v2363 = vmax.f32 %v1929, 0.0
  %v2364 = vmax.f32 %v1932, 0.0
  %v2365 = vmax.f32 %v1937, 0.0
  %v2366 = vmax.f32 %v1940, 0.0
  %v2367 = vmax.f32 %v1945, 0.0
  %v2368 = vmax.f32 %v1948, 0.0
  %v2369 = vmax.f32 %v1953, 0.0
  %v2370 = vmax.f32 %v1956, 0.0
  %v2371 = vmax.f32 %v1961, 0.0
  %v2372 = vmax.f32 %v1964, 0.0
  %v2373 = vmax.f32 %v1969, 0.0
  %v2374 = vmax.f32 %v1972, 0.0
  %v2375 = vmax.f32 %v1977, 0.0
  %v2376 = vmax.f32 %v1980, 0.0
  %v2377 = vmax.f32 %v1985, 0.0
  %v2378 = vmax.f32 %v1988, 0.0
  %v2379 = vmax.f32 %v1993, 0.0
  %v2380 = vmax.f32 %v1996, 0.0
  %v2381 = vmax.f32 %v2001, 0.0
  %v2382 = vmax.f32 %v2004, 0.0
  %v2383 = vmax.f32 %v2009, 0.0
  %v2384 = vmax.f32 %v2012, 0.0
  %v2385 = vmax.f32 %v2017, 0.0
  %v2386 = vmax.f32 %v2020, 0.0
  %v2387 = vmax.f32 %v2025, 0.0
  %v2388 = vmax.f32 %v2028, 0.0
  %v2389 = vmax.f32 %v2033, 0.0
  %v2390 = vmax.f32 %v2036, 0.0
  %v2391 = vmax.f32 %v2041, 0.0
  %v2392 = vmax.f32 %v2044, 0.0
  %v2393 = vmax.f32 %v2049, 0.0
  %v2394 = vmax.f32 %v2052, 0.0
  %v2395 = vmax.f32 %v2057, 0.0
  %v2396 = vmax.f32 %v2060, 0.0
  %v2397 = vmax.f32 %v2065, 0.0
  %v2398 = vmax.f32 %v2068, 0.0
  %v2399 = vmax.f32 %v2073, 0.0
  %v2400 = vmax.f32 %v2076, 0.0
  %v2401 = vmax.f32 %v2081, 0.0
  %v2402 = vmax.f32 %v2084, 0.0
  %v2403 = vmax.f32 %v2089, 0.0
  %v2404 = vmax.f32 %v2092, 0.0
  %v2405 = vmax.f32 %v2097, 0.0
  %v2406 = vmax.f32 %v2100, 0.0
  %v2407 = vmax.f32 %v2105, 0.0
  %v2408 = vmax.f32 %v2108, 0.0
  %v2409 = vmax.f32 %v2113, 0.0
  %v2410 = vmax.f32 %v2116, 0.0
  %v2411 = vmax.f32 %v2121, 0.0
  %v2412 = vmax.f32 %v2124, 0.0
  %v2413 = vmax.f32 %v2129, 0.0
  %v2414 = vmax.f32 %v2132, 0.0
  %v2415 = vmax.f32 %v2137, 0.0
  %v2416 = vmax.f32 %v2140, 0.0
  %v2417 = vmax.f32 %v2145, 0.0
  %v2418 = vmax.f32 %v2148, 0.0
  %v2419 = vmax.f32 %v2153, 0.0
  %v2420 = vmax.f32 %v2156, 0.0
  %v2421 = vmax.f32 %v2161, 0.0
  %v2422 = vmax.f32 %v2164, 0.0
  %v2423 = vadd.f32 %v2167, %v2168
  %v2424 = vadd.f32 %v2423, %v2169
  %v2425 = vadd.f32 %v2424, %v2170
  %v2426 = vadd.f32 %v2425, %v2171
  %v2427 = vadd.f32 %v2426, %v2172
  %v2428 = vadd.f32 %v2427, %v2173
  %v2429 = vadd.f32 %v2428, %v2174
  %v2430 = vadd.f32 %v2429, %v2175
  %v2431 = vadd.f32 %v2430, %v2176
  %v2432 = vadd.f32 %v2431, %v2177
  %v2433 = vadd.f32 %v2432, %v2178
  %v2434 = vadd.f32 %v2433, %v2179
  %v2435 = vadd.f32 %v2434, %v2180
  %v2436 = vadd.f32 %v2435, %v2181
  %v2437 = vadd.f32 %v2436, %v2182
  %v2438 = vadd.f32 %v2437, %v2183
  %v2439 = vadd.f32 %v2438, %v2184
  %v2440 = vadd.f32 %v2439, %v2185
  %v2441 = vadd.f32 %v2440, %v2186
  %v2442 = vadd.f32 %v2441, %v2187
  %v2443 = vadd.f32 %v2442, %v2188
  %v2444 = vadd.f32 %v2443, %v2189
  %v2445 = vadd.f32 %v2444, %v2190
  %v2446 = vadd.f32 %v2445, %v2191
  %v2447 = vadd.f32 %v2446, %v2192
  %v2448 = vadd.f32 %v2447, %v2193
  %v2449 = vadd.f32 %v2448, %v2194
  %v2450 = vadd.f32 %v2449, %v2195
  %v2451 = vadd.f32 %v2450, %v2196
  %v2452 = vadd.f32 %v2451, %v2197
  %v2453 = vadd.f32 %v2452, %v2198
  %v2454 = vrot.slane %v2453, 4
  %v2455 = vadd.f32 %v2453, %v2454
  %v2456 = vrot.slane %v2455, 2
  %v2457 = vadd.f32 %v2455, %v2456
  %v2458 = vrot.slane %v2457, 1
  %v2459 = vadd.f32 %v2457, %v2458
  %v2460 = vadd.f32 %v2199, %v2200
  %v2461 = vadd.f32 %v2460, %v2201
  %v2462 = vadd.f32 %v2461, %v2202
  %v2463 = vadd.f32 %v2462, %v2203
  %v2464 = vadd.f32 %v2463, %v2204
  %v2465 = vadd.f32 %v2464, %v2205
  %v2466 = vadd.f32 %v2465, %v2206
  %v2467 = vadd.f32 %v2466, %v2207
  %v2468 = vadd.f32 %v2467, %v2208
  %v2469 = vadd.f32 %v2468, %v2209
  %v2470 = vadd.f32 %v2469, %v2210
  %v2471 = vadd.f32 %v2470, %v2211
  %v2472 = vadd.f32 %v2471, %v2212
  %v2473 = vadd.f32 %v2472, %v2213
  %v2474 = vadd.f32 %v2473, %v2214
  %v2475 = vadd.f32 %v2474, %v2215
  %v2476 = vadd.f32 %v2475, %v2216
  %v2477 = vadd.f32 %v2476, %v2217
  %v2478 = vadd.f32 %v2477, %v2218
  %v2479 = vadd.f32 %v2478, %v2219
  %v2480 = vadd.f32 %v2479, %v2220
  %v2481 = vadd.f32 %v2480, %v2221
  %v2482 = vadd.f32 %v2481, %v2222
  %v2483 = vadd.f32 %v2482, %v2223
  %v2484 = vadd.f32 %v2483, %v2224
  %v2485 = vadd.f32 %v2484, %v2225
  %v2486 = vadd.f32 %v2485, %v2226
  %v2487 = vadd.f32 %v2486, %v2227
  %v2488 = vadd.f32 %v2487, %v2228
  %v2489 = vadd.f32 %v2488, %v2229
  %v2490 = vadd.f32 %v2489, %v2230
  %v2491 = vrot.slane %v2490, 4
  %v2492 = vadd.f32 %v2490, %v2491
  %v2493 = vrot.slane %v2492, 2
  %v2494 = vadd.f32 %v2492, %v2493
  %v2495 = vrot.slane %v2494, 1
  %v2496 = vadd.f32 %v2494, %v2495
  %v2497 = vadd.f32 %v2231, %v2232
  %v2498 = vadd.f32 %v2497, %v2233
  %v2499 = vadd.f32 %v2498, %v2234
  %v2500 = vadd.f32 %v2499, %v2235
  %v2501 = vadd.f32 %v2500, %v2236
  %v2502 = vadd.f32 %v2501, %v2237
  %v2503 = vadd.f32 %v2502, %v2238
  %v2504 = vadd.f32 %v2503, %v2239
  %v2505 = vadd.f32 %v2504, %v2240
  %v2506 = vadd.f32 %v2505, %v2241
  %v2507 = vadd.f32 %v2506, %v2242
  %v2508 = vadd.f32 %v2507, %v2243
  %v2509 = vadd.f32 %v2508, %v2244
  %v2510 = vadd.f32 %v2509, %v2245
  %v2511 = vadd.f32 %v2510, %v2246
  %v2512 = vadd.f32 %v2511, %v2247
  %v2513 = vadd.f32 %v2512, %v2248
  %v2514 = vadd.f32 %v2513, %v2249
  %v2515 = vadd.f32 %v2514, %v2250
  %v2516 = vadd.f32 %v2515, %v2251
  %v2517 = vadd.f32 %v2516, %v2252
  %v2518 = vadd.f32 %v2517, %v2253
  %v2519 = vadd.f32 %v2518, %v2254
  %v2520 = vadd.f32 %v2519, %v2255
  %v2521 = vadd.f32 %v2520, %v2256
  %v2522 = vadd.f32 %v2521, %v2257
  %v2523 = vadd.f32 %v2522, %v2258
  %v2524 = vadd.f32 %v2523, %v2259
  %v2525 = vadd.f32 %v2524, %v2260
  %v2526 = vadd.f32 %v2525, %v2261
  %v2527 = vadd.f32 %v2526, %v2262
  %v2528 = vrot.slane %v2527, 4
  %v2529 = vadd.f32 %v2527, %v2528
  %v2530 = vrot.slane %v2529, 2
  %v2531 = vadd.f32 %v2529, %v2530
  %v2532 = vrot.slane %v2531, 1
  %v2533 = vadd.f32 %v2531, %v2532
  %v2534 = vadd.f32 %v2263, %v2264
  %v2535 = vadd.f32 %v2534, %v2265
  %v2536 = vadd.f32 %v2535, %v2266
  %v2537 = vadd.f32 %v2536, %v2267
  %v2538 = vadd.f32 %v2537, %v2268
  %v2539 = vadd.f32 %v2538, %v2269
  %v2540 = vadd.f32 %v2539, %v2270
  %v2541 = vadd.f32 %v2540, %v2271
  %v2542 = vadd.f32 %v2541, %v2272
  %v2543 = vadd.f32 %v2542, %v2273
  %v2544 = vadd.f32 %v2543, %v2274
  %v2545 = vadd.f32 %v2544, %v2275
  %v2546 = vadd.f32 %v2545, %v2276
  %v2547 = vadd.f32 %v2546, %v2277
  %v2548 = vadd.f32 %v2547, %v2278
  %v2549 = vadd.f32 %v2548, %v2279
  %v2550 = vadd.f32 %v2549, %v2280
  %v2551 = vadd.f32 %v2550, %v2281
  %v2552 = vadd.f32 %v2551, %v2282
  %v2553 = vadd.f32 %v2552, %v2283
  %v2554 = vadd.f32 %v2553, %v2284
  %v2555 = vadd.f32 %v2554, %v2285
  %v2556 = vadd.f32 %v2555, %v2286
  %v2557 = vadd.f32 %v2556, %v2287
  %v2558 = vadd.f32 %v2557, %v2288
  %v2559 = vadd.f32 %v2558, %v2289
  %v2560 = vadd.f32 %v2559, %v2290
  %v2561 = vadd.f32 %v2560, %v2291
  %v2562 = vadd.f32 %v2561, %v2292
  %v2563 = vadd.f32 %v2562, %v2293
  %v2564 = vadd.f32 %v2563, %v2294
  %v2565 = vrot.slane %v2564, 4
  %v2566 = vadd.f32 %v2564, %v2565
  %v2567 = vrot.slane %v2566, 2
  %v2568 = vadd.f32 %v2566, %v2567
  %v2569 = vrot.slane %v2568, 1
  %v2570 = vadd.f32 %v2568, %v2569
  %v2571 = vadd.f32 %v2295, %v2296
  %v2572 = vadd.f32 %v2571, %v2297
  %v2573 = vadd.f32 %v2572, %v2298
  %v2574 = vadd.f32 %v2573, %v2299
  %v2575 = vadd.f32 %v2574, %v2300
  %v2576 = vadd.f32 %v2575, %v2301
  %v2577 = vadd.f32 %v2576, %v2302
  %v2578 = vadd.f32 %v2577, %v2303
  %v2579 = vadd.f32 %v2578, %v2304
  %v2580 = vadd.f32 %v2579, %v2305
  %v2581 = vadd.f32 %v2580, %v2306
  %v2582 = vadd.f32 %v2581, %v2307
  %v2583 = vadd.f32 %v2582, %v2308
  %v2584 = vadd.f32 %v2583, %v2309
  %v2585 = vadd.f32 %v2584, %v2310
  %v2586 = vadd.f32 %v2585, %v2311
  %v2587 = vadd.f32 %v2586, %v2312
  %v2588 = vadd.f32 %v2587, %v2313
  %v2589 = vadd.f32 %v2588, %v2314
  %v2590 = vadd.f32 %v2589, %v2315
  %v2591 = vadd.f32 %v2590, %v2316
  %v2592 = vadd.f32 %v2591, %v2317
  %v2593 = vadd.f32 %v2592, %v2318
  %v2594 = vadd.f32 %v2593, %v2319
  %v2595 = vadd.f32 %v2594, %v2320
  %v2596 = vadd.f32 %v2595, %v2321
  %v2597 = vadd.f32 %v2596, %v2322
  %v2598 = vadd.f32 %v2597, %v2323
  %v2599 = vadd.f32 %v2598, %v2324
  %v2600 = vadd.f32 %v2599, %v2325
  %v2601 = vadd.f32 %v2600, %v2326
  %v2602 = vrot.slane %v2601, 4
  %v2603 = vadd.f32 %v2601, %v2602
  %v2604 = vrot.slane %v2603, 2
  %v2605 = vadd.f32 %v2603, %v2604
  %v2606 = vrot.slane %v2605, 1
  %v2607 = vadd.f32 %v2605, %v2606
  %v2608 = vadd.f32 %v2327, %v2328
  %v2609 = vadd.f32 %v2608, %v2329
  %v2610 = vadd.f32 %v2609, %v2330
  %v2611 = vadd.f32 %v2610, %v2331
  %v2612 = vadd.f32 %v2611, %v2332
  %v2613 = vadd.f32 %v2612, %v2333
  %v2614 = vadd.f32 %v2613, %v2334
  %v2615 = vadd.f32 %v2614, %v2335
  %v2616 = vadd.f32 %v2615, %v2336
  %v2617 = vadd.f32 %v2616, %v2337
  %v2618 = vadd.f32 %v2617, %v2338
  %v2619 = vadd.f32 %v2618, %v2339
  %v2620 = vadd.f32 %v2619, %v2340
  %v2621 = vadd.f32 %v2620, %v2341
  %v2622 = vadd.f32 %v2621, %v2342
  %v2623 = vadd.f32 %v2622, %v2343
  %v2624 = vadd.f32 %v2623, %v2344
  %v2625 = vadd.f32 %v2624, %v2345
  %v2626 = vadd.f32 %v2625, %v2346
  %v2627 = vadd.f32 %v2626, %v2347
  %v2628 = vadd.f32 %v2627, %v2348
  %v2629 = vadd.f32 %v2628, %v2349
  %v2630 = vadd.f32 %v2629, %v2350
  %v2631 = vadd.f32 %v2630, %v2351
  %v2632 = vadd.f32 %v2631, %v2352
  %v2633 = vadd.f32 %v2632, %v2353
  %v2634 = vadd.f32 %v2633, %v2354
  %v2635 = vadd.f32 %v2634, %v2355
  %v2636 = vadd.f32 %v2635, %v2356
  %v2637 = vadd.f32 %v2636, %v2357
  %v2638 = vadd.f32 %v2637, %v2358
  %v2639 = vrot.slane %v2638, 4
  %v2640 = vadd.f32 %v2638, %v2639
  %v2641 = vrot.slane %v2640, 2
  %v2642 = vadd.f32 %v2640, %v2641
  %v2643 = vrot.slane %v2642, 1
  %v2644 = vadd.f32 %v2642, %v2643
  %v2645 = vadd.f32 %v2359, %v2360
  %v2646 = vadd.f32 %v2645, %v2361
  %v2647 = vadd.f32 %v2646, %v2362
  %v2648 = vadd.f32 %v2647, %v2363
  %v2649 = vadd.f32 %v2648, %v2364
  %v2650 = vadd.f32 %v2649, %v2365
  %v2651 = vadd.f32 %v2650, %v2366
  %v2652 = vadd.f32 %v2651, %v2367
  %v2653 = vadd.f32 %v2652, %v2368
  %v2654 = vadd.f32 %v2653, %v2369
  %v2655 = vadd.f32 %v2654, %v2370
  %v2656 = vadd.f32 %v2655, %v2371
  %v2657 = vadd.f32 %v2656, %v2372
  %v2658 = vadd.f32 %v2657, %v2373
  %v2659 = vadd.f32 %v2658, %v2374
  %v2660 = vadd.f32 %v2659, %v2375
  %v2661 = vadd.f32 %v2660, %v2376
  %v2662 = vadd.f32 %v2661, %v2377
  %v2663 = vadd.f32 %v2662, %v2378
  %v2664 = vadd.f32 %v2663, %v2379
  %v2665 = vadd.f32 %v2664, %v2380
  %v2666 = vadd.f32 %v2665, %v2381
  %v2667 = vadd.f32 %v2666, %v2382
  %v2668 = vadd.f32 %v2667, %v2383
  %v2669 = vadd.f32 %v2668, %v2384
  %v2670 = vadd.f32 %v2669, %v2385
  %v2671 = vadd.f32 %v2670, %v2386
  %v2672 = vadd.f32 %v2671, %v2387
  %v2673 = vadd.f32 %v2672, %v2388
  %v2674 = vadd.f32 %v2673, %v2389
  %v2675 = vadd.f32 %v2674, %v2390
  %v2676 = vrot.slane %v2675, 4
  %v2677 = vadd.f32 %v2675, %v2676
  %v2678 = vrot.slane %v2677, 2
  %v2679 = vadd.f32 %v2677, %v2678
  %v2680 = vrot.slane %v2679, 1
  %v2681 = vadd.f32 %v2679, %v2680
  %v2682 = vadd.f32 %v2391, %v2392
  %v2683 = vadd.f32 %v2682, %v2393
  %v2684 = vadd.f32 %v2683, %v2394
  %v2685 = vadd.f32 %v2684, %v2395
  %v2686 = vadd.f32 %v2685, %v2396
  %v2687 = vadd.f32 %v2686, %v2397
  %v2688 = vadd.f32 %v2687, %v2398
  %v2689 = vadd.f32 %v2688, %v2399
  %v2690 = vadd.f32 %v2689, %v2400
  %v2691 = vadd.f32 %v2690, %v2401
  %v2692 = vadd.f32 %v2691, %v2402
  %v2693 = vadd.f32 %v2692, %v2403
  %v2694 = vadd.f32 %v2693, %v2404
  %v2695 = vadd.f32 %v2694, %v2405
  %v2696 = vadd.f32 %v2695, %v2406
  %v2697 = vadd.f32 %v2696, %v2407
  %v2698 = vadd.f32 %v2697, %v2408
  %v2699 = vadd.f32 %v2698, %v2409
  %v2700 = vadd.f32 %v2699, %v2410
  %v2701 = vadd.f32 %v2700, %v2411
  %v2702 = vadd.f32 %v2701, %v2412
  %v2703 = vadd.f32 %v2702, %v2413
  %v2704 = vadd.f32 %v2703, %v2414
  %v2705 = vadd.f32 %v2704, %v2415
  %v2706 = vadd.f32 %v2705, %v2416
  %v2707 = vadd.f32 %v2706, %v2417
  %v2708 = vadd.f32 %v2707, %v2418
  %v2709 = vadd.f32 %v2708, %v2419
  %v2710 = vadd.f32 %v2709, %v2420
  %v2711 = vadd.f32 %v2710, %v2421
  %v2712 = vadd.f32 %v2711, %v2422
  %v2713 = vrot.slane %v2712, 4
  %v2714 = vadd.f32 %v2712, %v2713
  %v2715 = vrot.slane %v2714, 2
  %v2716 = vadd.f32 %v2714, %v2715
  %v2717 = vrot.slane %v2716, 1
  %v2718 = vadd.f32 %v2716, %v2717
  %v2719 = vmul.f32 %v2459, 0.00390625
  %v2720 = vmul.f32 %v2496, 0.00390625
  %v2721 = vmul.f32 %v2533, 0.00390625
  %v2722 = vmul.f32 %v2570, 0.00390625
  %v2723 = vmul.f32 %v2607, 0.00390625
  %v2724 = vmul.f32 %v2644, 0.00390625
  %v2725 = vmul.f32 %v2681, 0.00390625
  %v2726 = vmul.f32 %v2718, 0.00390625
  %vm2735 = vcmask 1041409
  %v2736 = vsel %vm2735, %v2720, %v2719
  %vm2737 = vcmask 1042434
  %v2738 = vsel %vm2737, %v2721, %v2736
  %vm2739 = vcmask 1043459
  %v2740 = vsel %vm2739, %v2722, %v2738
  %vm2741 = vcmask 1044484
  %v2742 = vsel %vm2741, %v2723, %v2740
  %vm2743 = vcmask 1045509
  %v2744 = vsel %vm2743, %v2724, %v2742
  %vm2745 = vcmask 1046534
  %v2746 = vsel %vm2745, %v2725, %v2744
  %vm2747 = vcmask 1047559
  %v2748 = vsel %vm2747, %v2726, %v2746
  %2750 = vst [vmem:[%s3] sm:$0xff] %v2748
  // Predicated region
  $region14: #{_lambda_.2} parent=0 // pred_check
    _
  $region15: #{_lambda_.2} parent=0 // pred_check_branch
    %2752 = sbr.rel (0) target = $region17
  $region16: #{_lambda_.2} parent=0 // pred_region
    _
  $region17: #{_lambda_.2} parent=0 // pred_fallthru
    _
  // Predicated region
  $region18: #{_lambda_.2} parent=0 // pred_check
    _
  $region19: #{_lambda_.2} parent=0 // pred_check_branch
    %2754 = sbr.rel (0) target = $region21
  $region20: #{_lambda_.2} parent=0 // pred_region
    _
  $region21: #{_lambda_.2} parent=0 // pred_fallthru
    _

</llo_original>
